<compile_context>
chip_gen: v5e
topology: v5e:2x2
jax: 0.10.0
libtpu: 0.0.40
codegen_flags: <defaults>
</compile_context>

<pallas_src>
import jax
import jax.numpy as jnp
from jax.experimental import pallas as pl
from jax.experimental.pallas import tpu as pltpu

_MAX_TILE_HW = 2048  # lane-dim tile cap; ~2-3 MiB live f32 per step at C=32


def _pick_tile_hw(hw, cap=_MAX_TILE_HW):
    """Largest legal lane tile: either the full spatial extent or a multiple of 128."""
    if hw <= cap:
        return hw
    for t in range(cap - cap % 128, 0, -128):
        if hw % t == 0:
            return t
    # TODO(synk): HW with no 128-multiple divisor falls back to one full-row block.
    return hw


# ----------------------------------------------------------------------------
# Fused per-pixel kernel (channels-first tiles: (C, TILE_HW)).
#   small  : gate_s = sigmoid(Wsf^T @ (x*ca_s + x*sa_s) + bsf)
#   medium : gate_m = (ca_m * w_med) * sa_m          (selector weight pre-folded)
#   large  : gate_l = sigmoid(Wl2^T @ relu(h_pre + bl1) + bl2)
#   out    = x * (w_small*gate_s + gate_m + w_large*gate_l)
# ----------------------------------------------------------------------------
def _fused_kernel(wsel_ref, x_ref, ca_s_ref, sa_s_ref, wsf_t_ref, bsf_ref,
                  ca_mw_ref, sa_m_ref, hpre_ref, bl1_ref, wl2_t_ref, bl2_ref,
                  o_ref):
    b = pl.program_id(0)
    w_small = wsel_ref[b, 0]                         # SMEM scalar
    w_large = wsel_ref[b, 1]                         # SMEM scalar

    x = x_ref[...]                                   # (C, T) lane-dense

    # --- small tumor branch (SmallObjectAttention) ---
    out_s = x * (ca_s_ref[...] + sa_s_ref[...])      # = x*ca_s + x*sa_s
    gate_s = jax.nn.sigmoid(
        jnp.dot(wsf_t_ref[...], out_s, preferred_element_type=jnp.float32)
        + bsf_ref[...])

    # --- large tumor branch (ScaleAwareAttention fusion MLP) ---
    # h_pre already has the (linear) first 1x1 conv applied in the wrapper.
    h = jnp.maximum(hpre_ref[...] + bl1_ref[...], 0.0)   # (rc, T), rc = C//16
    wl2_t = wl2_t_ref[...]                               # (C, rc)
    rc = h.shape[0]
    att_pre = wl2_t[:, 0:1] * h[0:1, :]                  # VPU broadcast-MACs
    for k in range(1, rc):                               # rc is tiny and static
        att_pre = att_pre + wl2_t[:, k:k + 1] * h[k:k + 1, :]
    gate_l = jax.nn.sigmoid(att_pre + bl2_ref[...])

    # --- medium tumor branch (CBAM) + size-specific weighting ---
    gate = (w_small * gate_s
            + ca_mw_ref[...] * sa_m_ref[...]             # ca_m already * w_med
            + w_large * gate_l)
    o_ref[...] = (x * gate).astype(o_ref.dtype)


def _run_fused(x_cf, wsel02, ca_s, sa_s, wsf_t, bsf, ca_mw, sa_m,
               h_pre, bl1, wl2_t, bl2):
    B, C, HW = x_cf.shape
    rc = h_pre.shape[1]
    tile = _pick_tile_hw(HW)
    grid = (B, HW // tile)
    return pl.pallas_call(
        _fused_kernel,
        out_shape=jax.ShapeDtypeStruct((B, C, HW), jnp.float32),
        grid_spec=pltpu.PrefetchScalarGridSpec(
            num_scalar_prefetch=0,
            grid=grid,
            in_specs=[
                pl.BlockSpec(memory_space=pltpu.MemorySpace.SMEM),         # wsel02 (B,2)
                pl.BlockSpec((None, C, tile), lambda b, s: (b, 0, s)),     # x
                pl.BlockSpec((None, C, 1), lambda b, s: (b, 0, 0)),        # ca_s
                pl.BlockSpec((None, 1, tile), lambda b, s: (b, 0, s)),     # sa_s
                pl.BlockSpec((C, C), lambda b, s: (0, 0)),                 # wsf^T
                pl.BlockSpec((C, 1), lambda b, s: (0, 0)),                 # bsf
                pl.BlockSpec((None, C, 1), lambda b, s: (b, 0, 0)),        # ca_m*w_med
                pl.BlockSpec((None, 1, tile), lambda b, s: (b, 0, s)),     # sa_m
                pl.BlockSpec((None, rc, tile), lambda b, s: (b, 0, s)),    # h_pre
                pl.BlockSpec((rc, 1), lambda b, s: (0, 0)),                # bl1
                pl.BlockSpec((C, rc), lambda b, s: (0, 0)),                # wl2^T
                pl.BlockSpec((C, 1), lambda b, s: (0, 0)),                 # bl2
            ],
            out_specs=pl.BlockSpec((None, C, tile), lambda b, s: (b, 0, s)),
        ),
        compiler_params=pltpu.CompilerParams(
            dimension_semantics=("parallel", "parallel")),
    )(wsel02, x_cf, ca_s, sa_s, wsf_t, bsf, ca_mw, sa_m, h_pre, bl1, wl2_t, bl2)


# ----------------------------------------------------------------------------
# Plain-JAX glue (tiny per-batch MLPs, pooling, small spatial convs, upsampling)
# ----------------------------------------------------------------------------
def _conv2d_same(x_nhwc, w_hwio):
    return jax.lax.conv_general_dilated(
        x_nhwc, w_hwio, window_strides=(1, 1), padding="SAME",
        dimension_numbers=("NHWC", "HWIO", "NHWC"))


def _adaptive_avg_pool(x_nhwc, out_size):
    B, H, W, C = x_nhwc.shape
    kh, kw = H // out_size, W // out_size
    return x_nhwc.reshape(B, out_size, kh, out_size, kw, C).mean(axis=(2, 4))


def _mlp(v, w1, w2):
    return jnp.maximum(v @ w1, 0.0) @ w2


def init_params(key, C, reduction_ratio=16):
    ks = jax.random.split(key, 16)

    def rnd(k, shape, scale=0.1):
        return jax.random.normal(k, shape, jnp.float32) * scale

    rc = max(1, C // reduction_ratio)                   # 2 for C=32
    rc_small = max(1, C // (reduction_ratio // 2))      # 4 for C=32
    bn_scale = 1.0 / jnp.sqrt(1.0 + 1e-5)               # eval-mode BN folding

    p = {}
    # SmallObjectAttention
    p["ca_s_w1"] = rnd(ks[0], (C, rc_small))
    p["ca_s_w2"] = rnd(ks[1], (rc_small, C))
    p["sos_conv"] = rnd(ks[2], (3, 3, 2, 1))            # 3x3 spatial conv (HWIO)
    p["sf_w"] = rnd(ks[3], (C, C)) * bn_scale           # fusion 1x1 conv (BN folded)
    p["sf_b"] = (rnd(ks[4], (C,)) * bn_scale).reshape(1, C)
    # CBAM
    p["ca_m_w1"] = rnd(ks[5], (C, rc))
    p["ca_m_w2"] = rnd(ks[6], (rc, C))
    p["sa7_conv"] = rnd(ks[7], (7, 7, 2, 1))            # 7x7 spatial conv (HWIO)
    # ScaleAwareAttention
    p["pyr_w"] = [rnd(ks[8 + i], (C, rc)) for i in range(4)]
    p["l_w1"] = rnd(ks[12], (4 * rc, rc)) * bn_scale
    p["l_b1"] = jnp.zeros((1, rc), jnp.float32)
    p["l_w2"] = rnd(ks[13], (rc, C)) * bn_scale
    p["l_b2"] = jnp.zeros((1, C), jnp.float32)
    # attention_selector
    p["sel_w1"] = rnd(ks[14], (C, rc))
    p["sel_w2"] = rnd(ks[15], (rc, 3))
    return p


def tumor_size_specific_attention(x_nchw, p):
    B, C, H, W = x_nchw.shape
    HW = H * W
    x_nchw = x_nchw.astype(jnp.float32)
    x_cf = x_nchw.reshape(B, C, HW)                       # kernel layout [B,C,HW]
    x_nhwc = jnp.transpose(x_nchw, (0, 2, 3, 1))          # for pools / small convs

    # ---- channel attentions (global avg/max pool + shared MLP + sigmoid) ----
    avg = x_nhwc.mean(axis=(1, 2))                        # (B, C)
    mx = x_nhwc.max(axis=(1, 2))
    ca_s = jax.nn.sigmoid(_mlp(avg, p["ca_s_w1"], p["ca_s_w2"])
                          + _mlp(mx, p["ca_s_w1"], p["ca_s_w2"]))   # (B, C)
    ca_m = jax.nn.sigmoid(_mlp(avg, p["ca_m_w1"], p["ca_m_w2"])
                          + _mlp(mx, p["ca_m_w1"], p["ca_m_w2"]))   # (B, C)

    # ---- spatial attention maps (channel mean/max fused by XLA into the convs) ----
    red_s = jnp.stack([x_nhwc.mean(-1), x_nhwc.max(-1)], axis=-1)   # (B,H,W,2)
    x1 = x_nhwc * ca_m[:, None, None, :]
    red_m = jnp.stack([x1.mean(-1), x1.max(-1)], axis=-1)
    sa_s = jax.nn.sigmoid(_conv2d_same(red_s, p["sos_conv"])).reshape(B, 1, HW)
    sa_m = jax.nn.sigmoid(_conv2d_same(red_m, p["sa7_conv"])).reshape(B, 1, HW)

    # ---- pyramid features: hoist the linear fusion conv1 (wl1) through the
    #      bilinear upsample so only rc channels enter the Pallas kernel ----
    rc = p["l_w1"].shape[-1]
    h_pre = jnp.zeros((B, H, W, rc), jnp.float32)
    for i, size in enumerate((1, 2, 4, 8)):
        w_i = p["pyr_w"][i] @ p["l_w1"][i * rc:(i + 1) * rc, :]     # (C, rc)
        pooled = _adaptive_avg_pool(x_nhwc, size)                   # (B,s,s,C)
        lvl = pooled @ w_i                                          # 1x1 convs fused
        h_pre = h_pre + jax.image.resize(lvl, (B, H, W, rc), method="bilinear")
    h_pre_cf = jnp.transpose(h_pre, (0, 3, 1, 2)).reshape(B, rc, HW)

    # ---- attention selector (global avg pool + MLP + softmax over 3) ----
    wsel = jax.nn.softmax(_mlp(avg, p["sel_w1"], p["sel_w2"]), axis=-1)   # (B,3)
    ca_mw = (ca_m * wsel[:, 1:2]).reshape(B, C, 1)        # fold medium weight
    wsel02 = jnp.stack([wsel[:, 0], wsel[:, 2]], axis=-1)  # (B,2) -> SMEM scalars

    # ---- fused Pallas kernel: per-pixel hot path of all three branches ----
    out_cf = _run_fused(
        x_cf, wsel02,
        ca_s.reshape(B, C, 1), sa_s,
        p["sf_w"].T, p["sf_b"].reshape(C, 1),
        ca_mw, sa_m,
        h_pre_cf, p["l_b1"].reshape(rc, 1),
        p["l_w2"].T, p["l_b2"].reshape(C, 1))
    return out_cf.reshape(B, C, H, W)


if __name__ == "__main__":
    key = jax.random.PRNGKey(0)
    kx, kp = jax.random.split(key)
    B, C, H, W = 2, 32, 16, 16
    x = jax.random.normal(kx, (B, C, H, W), jnp.float32)
    params = init_params(kp, C, reduction_ratio=16)
    fwd = jax.jit(tumor_size_specific_attention)
    out = fwd(x, params)
    out = jax.block_until_ready(out)
    assert out.shape == (B, C, H, W) and out.dtype == jnp.float32
    assert bool(jnp.all(jnp.isfinite(out)))
    print("KERNEL_OK")
</pallas_src>

<mosaic_0001>
module attributes {stable_mosaic.version = 11 : i64} {
  func.func @_fused_kernel(%arg0: i32, %arg1: i32, %arg2: memref<2x2xf32, #tpu.memory_space<smem>>, %arg3: memref<1x32x256xf32, #tpu.memory_space<vmem>>, %arg4: memref<1x32x1xf32, #tpu.memory_space<vmem>>, %arg5: memref<1x1x256xf32, #tpu.memory_space<vmem>>, %arg6: memref<32x32xf32, #tpu.memory_space<vmem>>, %arg7: memref<32x1xf32, #tpu.memory_space<vmem>>, %arg8: memref<1x32x1xf32, #tpu.memory_space<vmem>>, %arg9: memref<1x1x256xf32, #tpu.memory_space<vmem>>, %arg10: memref<1x2x256xf32, #tpu.memory_space<vmem>>, %arg11: memref<2x1xf32, #tpu.memory_space<vmem>>, %arg12: memref<32x2xf32, #tpu.memory_space<vmem>>, %arg13: memref<32x1xf32, #tpu.memory_space<vmem>>, %arg14: memref<1x32x256xf32, #tpu.memory_space<vmem>>) attributes {dimension_semantics = [#tpu.dimension_semantics<parallel>, #tpu.dimension_semantics<parallel>], iteration_bounds = array<i64: 2, 1>, scalar_prefetch = 0 : i64, scratch_operands = 0 : i64, tpu.core_type = #tpu.core_type<tc>, window_params = [{transform_indices = @transform_0, window_bounds = array<i64: 2, 2>}, {transform_indices = @transform_1, window_bounds = array<i64: 1, 32, 256>}, {transform_indices = @transform_2, window_bounds = array<i64: 1, 32, 1>}, {transform_indices = @transform_3, window_bounds = array<i64: 1, 1, 256>}, {pipeline_mode = #tpu.pipeline_mode<synchronous>, transform_indices = @transform_4, window_bounds = array<i64: 32, 32>}, {pipeline_mode = #tpu.pipeline_mode<synchronous>, transform_indices = @transform_5, window_bounds = array<i64: 32, 1>}, {transform_indices = @transform_6, window_bounds = array<i64: 1, 32, 1>}, {transform_indices = @transform_7, window_bounds = array<i64: 1, 1, 256>}, {transform_indices = @transform_8, window_bounds = array<i64: 1, 2, 256>}, {pipeline_mode = #tpu.pipeline_mode<synchronous>, transform_indices = @transform_9, window_bounds = array<i64: 2, 1>}, {pipeline_mode = #tpu.pipeline_mode<synchronous>, transform_indices = @transform_10, window_bounds = array<i64: 32, 2>}, {pipeline_mode = #tpu.pipeline_mode<synchronous>, transform_indices = @transform_11, window_bounds = array<i64: 32, 1>}, {transform_indices = @transform_12, window_bounds = array<i64: 1, 32, 256>}]} {
    %0 = arith.index_cast %arg0 : i32 to index
    %c0 = arith.constant 0 : index
    %1 = memref.load %arg2[%0, %c0] : memref<2x2xf32, #tpu.memory_space<smem>>
    %2 = arith.index_cast %arg0 : i32 to index
    %c1 = arith.constant 1 : index
    %3 = memref.load %arg2[%2, %c1] : memref<2x2xf32, #tpu.memory_space<smem>>
    %c0_0 = arith.constant 0 : index
    %c0_1 = arith.constant 0 : index
    %c0_2 = arith.constant 0 : index
    %4 = vector.load %arg3[%c0_0, %c0_1, %c0_2] : memref<1x32x256xf32, #tpu.memory_space<vmem>>, vector<1x32x256xf32>
    %5 = vector.shape_cast %4 : vector<1x32x256xf32> to vector<32x256xf32>
    %c0_3 = arith.constant 0 : index
    %c0_4 = arith.constant 0 : index
    %c0_5 = arith.constant 0 : index
    %6 = vector.load %arg4[%c0_3, %c0_4, %c0_5] : memref<1x32x1xf32, #tpu.memory_space<vmem>>, vector<1x32x1xf32>
    %7 = vector.shape_cast %6 : vector<1x32x1xf32> to vector<32x1xf32>
    %c0_6 = arith.constant 0 : index
    %c0_7 = arith.constant 0 : index
    %c0_8 = arith.constant 0 : index
    %8 = vector.load %arg5[%c0_6, %c0_7, %c0_8] : memref<1x1x256xf32, #tpu.memory_space<vmem>>, vector<1x1x256xf32>
    %9 = vector.shape_cast %8 : vector<1x1x256xf32> to vector<1x256xf32>
    %10 = vector.broadcast %7 : vector<32x1xf32> to vector<32x256xf32>
    %11 = vector.broadcast %9 : vector<1x256xf32> to vector<32x256xf32>
    %12 = arith.addf %10, %11 : vector<32x256xf32>
    %13 = arith.mulf %5, %12 : vector<32x256xf32>
    %c0_9 = arith.constant 0 : index
    %c0_10 = arith.constant 0 : index
    %14 = vector.load %arg6[%c0_9, %c0_10] : memref<32x32xf32, #tpu.memory_space<vmem>>, vector<32x32xf32>
    %cst = arith.constant dense<0.000000e+00> : vector<32x256xf32>
    %15 = tpu.matmul %14, %13, %cst {dimension_numbers = #tpu.dot_dimension_numbers<[1], [0], [0], [1], [0, 0, 1, 1], [], []>} : vector<32x32xf32>, vector<32x256xf32>, vector<32x256xf32> -> vector<32x256xf32>
    %c0_11 = arith.constant 0 : index
    %c0_12 = arith.constant 0 : index
    %16 = vector.load %arg7[%c0_11, %c0_12] : memref<32x1xf32, #tpu.memory_space<vmem>>, vector<32x1xf32>
    %17 = vector.broadcast %16 : vector<32x1xf32> to vector<32x256xf32>
    %18 = arith.addf %15, %17 : vector<32x256xf32>
    %19 = arith.negf %18 : vector<32x256xf32>
    %20 = math.exp %19 : vector<32x256xf32>
    %cst_13 = arith.constant 1.000000e+00 : f32
    %21 = vector.broadcast %cst_13 : f32 to vector<32x256xf32>
    %22 = arith.addf %21, %20 : vector<32x256xf32>
    %23 = arith.divf %21, %22 : vector<32x256xf32>
    %c0_14 = arith.constant 0 : index
    %c0_15 = arith.constant 0 : index
    %c0_16 = arith.constant 0 : index
    %24 = vector.load %arg10[%c0_14, %c0_15, %c0_16] : memref<1x2x256xf32, #tpu.memory_space<vmem>>, vector<1x2x256xf32>
    %25 = vector.shape_cast %24 : vector<1x2x256xf32> to vector<2x256xf32>
    %c0_17 = arith.constant 0 : index
    %c0_18 = arith.constant 0 : index
    %26 = vector.load %arg11[%c0_17, %c0_18] : memref<2x1xf32, #tpu.memory_space<vmem>>, vector<2x1xf32>
    %27 = vector.broadcast %26 : vector<2x1xf32> to vector<2x256xf32>
    %28 = arith.addf %25, %27 : vector<2x256xf32>
    %cst_19 = arith.constant 0.000000e+00 : f32
    %29 = vector.broadcast %cst_19 : f32 to vector<2x256xf32>
    %30 = arith.maximumf %28, %29 : vector<2x256xf32>
    %c0_20 = arith.constant 0 : index
    %c0_21 = arith.constant 0 : index
    %31 = vector.load %arg12[%c0_20, %c0_21] : memref<32x2xf32, #tpu.memory_space<vmem>>, vector<32x2xf32>
    %32 = vector.extract_strided_slice %31 {offsets = [0, 0], sizes = [32, 1], strides = [1, 1]} : vector<32x2xf32> to vector<32x1xf32>
    %33 = vector.extract_strided_slice %30 {offsets = [0, 0], sizes = [1, 256], strides = [1, 1]} : vector<2x256xf32> to vector<1x256xf32>
    %34 = vector.broadcast %32 : vector<32x1xf32> to vector<32x256xf32>
    %35 = vector.broadcast %33 : vector<1x256xf32> to vector<32x256xf32>
    %36 = arith.mulf %34, %35 : vector<32x256xf32>
    %37 = vector.extract_strided_slice %31 {offsets = [0, 1], sizes = [32, 1], strides = [1, 1]} : vector<32x2xf32> to vector<32x1xf32>
    %38 = vector.extract_strided_slice %30 {offsets = [1, 0], sizes = [1, 256], strides = [1, 1]} : vector<2x256xf32> to vector<1x256xf32>
    %39 = vector.broadcast %37 : vector<32x1xf32> to vector<32x256xf32>
    %40 = vector.broadcast %38 : vector<1x256xf32> to vector<32x256xf32>
    %41 = arith.mulf %39, %40 : vector<32x256xf32>
    %42 = arith.addf %36, %41 : vector<32x256xf32>
    %c0_22 = arith.constant 0 : index
    %c0_23 = arith.constant 0 : index
    %43 = vector.load %arg13[%c0_22, %c0_23] : memref<32x1xf32, #tpu.memory_space<vmem>>, vector<32x1xf32>
    %44 = vector.broadcast %43 : vector<32x1xf32> to vector<32x256xf32>
    %45 = arith.addf %42, %44 : vector<32x256xf32>
    %46 = arith.negf %45 : vector<32x256xf32>
    %47 = math.exp %46 : vector<32x256xf32>
    %cst_24 = arith.constant 1.000000e+00 : f32
    %48 = vector.broadcast %cst_24 : f32 to vector<32x256xf32>
    %49 = arith.addf %48, %47 : vector<32x256xf32>
    %50 = arith.divf %48, %49 : vector<32x256xf32>
    %51 = vector.broadcast %1 : f32 to vector<32x256xf32>
    %52 = arith.mulf %51, %23 : vector<32x256xf32>
    %c0_25 = arith.constant 0 : index
    %c0_26 = arith.constant 0 : index
    %c0_27 = arith.constant 0 : index
    %53 = vector.load %arg8[%c0_25, %c0_26, %c0_27] : memref<1x32x1xf32, #tpu.memory_space<vmem>>, vector<1x32x1xf32>
    %54 = vector.shape_cast %53 : vector<1x32x1xf32> to vector<32x1xf32>
    %c0_28 = arith.constant 0 : index
    %c0_29 = arith.constant 0 : index
    %c0_30 = arith.constant 0 : index
    %55 = vector.load %arg9[%c0_28, %c0_29, %c0_30] : memref<1x1x256xf32, #tpu.memory_space<vmem>>, vector<1x1x256xf32>
    %56 = vector.shape_cast %55 : vector<1x1x256xf32> to vector<1x256xf32>
    %57 = vector.broadcast %54 : vector<32x1xf32> to vector<32x256xf32>
    %58 = vector.broadcast %56 : vector<1x256xf32> to vector<32x256xf32>
    %59 = arith.mulf %57, %58 : vector<32x256xf32>
    %60 = arith.addf %52, %59 : vector<32x256xf32>
    %61 = vector.broadcast %3 : f32 to vector<32x256xf32>
    %62 = arith.mulf %61, %50 : vector<32x256xf32>
    %63 = arith.addf %60, %62 : vector<32x256xf32>
    %64 = arith.mulf %5, %63 : vector<32x256xf32>
    %c0_31 = arith.constant 0 : index
    %c0_32 = arith.constant 0 : index
    %c0_33 = arith.constant 0 : index
    %65 = vector.load %arg14[%c0_31, %c0_32, %c0_33] : memref<1x32x256xf32, #tpu.memory_space<vmem>>, vector<1x32x256xf32>
    %66 = vector.shape_cast %65 : vector<1x32x256xf32> to vector<32x256xf32>
    %67 = vector.shape_cast %64 : vector<32x256xf32> to vector<1x32x256xf32>
    tpu.vector_store %arg14[%c0_31, %c0_32, %c0_33], %67 {strides = array<i32>} : memref<1x32x256xf32, #tpu.memory_space<vmem>>, vector<1x32x256xf32>,
    return
  }
  func.func @transform_0(%arg0: i32, %arg1: i32) -> (i32, i32) {
    %c0_i32 = arith.constant 0 : i32
    %c0_i32_0 = arith.constant 0 : i32
    %c0_i32_1 = arith.constant 0 : i32
    return %c0_i32, %c0_i32_0 : i32, i32
  }
  func.func @transform_1(%arg0: i32, %arg1: i32) -> (i32, i32, i32) {
    %c0_i32 = arith.constant 0 : i32
    %c0_i32_0 = arith.constant 0 : i32
    return %arg0, %c0_i32, %arg1 : i32, i32, i32
  }
  func.func @transform_2(%arg0: i32, %arg1: i32) -> (i32, i32, i32) {
    %c0_i32 = arith.constant 0 : i32
    %c0_i32_0 = arith.constant 0 : i32
    %c0_i32_1 = arith.constant 0 : i32
    return %arg0, %c0_i32, %c0_i32_0 : i32, i32, i32
  }
  func.func @transform_3(%arg0: i32, %arg1: i32) -> (i32, i32, i32) {
    %c0_i32 = arith.constant 0 : i32
    %c0_i32_0 = arith.constant 0 : i32
    return %arg0, %c0_i32, %arg1 : i32, i32, i32
  }
  func.func @transform_4(%arg0: i32, %arg1: i32) -> (i32, i32) {
    %c0_i32 = arith.constant 0 : i32
    %c0_i32_0 = arith.constant 0 : i32
    %c0_i32_1 = arith.constant 0 : i32
    return %c0_i32, %c0_i32_0 : i32, i32
  }
  func.func @transform_5(%arg0: i32, %arg1: i32) -> (i32, i32) {
    %c0_i32 = arith.constant 0 : i32
    %c0_i32_0 = arith.constant 0 : i32
    %c0_i32_1 = arith.constant 0 : i32
    return %c0_i32, %c0_i32_0 : i32, i32
  }
  func.func @transform_6(%arg0: i32, %arg1: i32) -> (i32, i32, i32) {
    %c0_i32 = arith.constant 0 : i32
    %c0_i32_0 = arith.constant 0 : i32
    %c0_i32_1 = arith.constant 0 : i32
    return %arg0, %c0_i32, %c0_i32_0 : i32, i32, i32
  }
  func.func @transform_7(%arg0: i32, %arg1: i32) -> (i32, i32, i32) {
    %c0_i32 = arith.constant 0 : i32
    %c0_i32_0 = arith.constant 0 : i32
    return %arg0, %c0_i32, %arg1 : i32, i32, i32
  }
  func.func @transform_8(%arg0: i32, %arg1: i32) -> (i32, i32, i32) {
    %c0_i32 = arith.constant 0 : i32
    %c0_i32_0 = arith.constant 0 : i32
    return %arg0, %c0_i32, %arg1 : i32, i32, i32
  }
  func.func @transform_9(%arg0: i32, %arg1: i32) -> (i32, i32) {
    %c0_i32 = arith.constant 0 : i32
    %c0_i32_0 = arith.constant 0 : i32
    %c0_i32_1 = arith.constant 0 : i32
    return %c0_i32, %c0_i32_0 : i32, i32
  }
  func.func @transform_10(%arg0: i32, %arg1: i32) -> (i32, i32) {
    %c0_i32 = arith.constant 0 : i32
    %c0_i32_0 = arith.constant 0 : i32
    %c0_i32_1 = arith.constant 0 : i32
    return %c0_i32, %c0_i32_0 : i32, i32
  }
  func.func @transform_11(%arg0: i32, %arg1: i32) -> (i32, i32) {
    %c0_i32 = arith.constant 0 : i32
    %c0_i32_0 = arith.constant 0 : i32
    %c0_i32_1 = arith.constant 0 : i32
    return %c0_i32, %c0_i32_0 : i32, i32
  }
  func.func @transform_12(%arg0: i32, %arg1: i32) -> (i32, i32, i32) {
    %c0_i32 = arith.constant 0 : i32
    %c0_i32_0 = arith.constant 0 : i32
    return %arg0, %c0_i32, %arg1 : i32, i32, i32
  }
}

</mosaic_0001>

<llo_original>
// kernel: tumor_size_specific_attention.1
$region0: #{tumor_size_specific_attention.1}
  #allocation0 [shape = 'u32[]', space=smem, size = 0x4, offset = 0x4, fixed_abs, tag = 'smem constant byte address 0x4 - core index']
  #allocation1 [shape = 'u32[72,128]{1,0:T(1,128)}', space=vmem, size = 0x9000, scoped, tag = 'internal scratch']
  %s0 = inlined_call_operand.vmem [shape: f32[2,2], index: 0, kind: input, shape index: {}]
  %s1 = inlined_call_operand.vmem [shape: f32[2,32,256], index: 1, kind: input, shape index: {}]
  %s2 = inlined_call_operand.vmem [shape: f32[2,32,1], index: 2, kind: input, shape index: {}]
  %s3 = inlined_call_operand.vmem [shape: f32[2,1,256], index: 3, kind: input, shape index: {}]
  %s4 = inlined_call_operand.vmem [shape: f32[32,32], index: 4, kind: input, shape index: {}]
  %s5 = inlined_call_operand.vmem [shape: f32[32,1], index: 5, kind: input, shape index: {}]
  %s6 = inlined_call_operand.vmem [shape: f32[2,32,1], index: 6, kind: input, shape index: {}]
  %s7 = inlined_call_operand.vmem [shape: f32[2,1,256], index: 7, kind: input, shape index: {}]
  %s8 = inlined_call_operand.vmem [shape: f32[2,2,256], index: 8, kind: input, shape index: {}]
  %s9 = inlined_call_operand.vmem [shape: f32[2,1], index: 9, kind: input, shape index: {}]
  %s10 = inlined_call_operand.vmem [shape: f32[32,2], index: 10, kind: input, shape index: {}]
  %s11 = inlined_call_operand.vmem [shape: f32[32,1], index: 11, kind: input, shape index: {}]
  %s12 = inlined_call_operand.vmem [shape: f32[2,32,256], index: 12, kind: output, shape index: {}]
  %s13 = sld [smem:[#allocation0]]
  $region85: #{tumor_size_specific_attention.1} parent=0
    _
  %s15 = ssub.s32 1, %s13
  %s16 = scalar_select 0, %s15, %s13
  $region1: #{tumor_size_specific_attention.1} parent=0
    #allocation2 [shape = 'u8[1024]{0}', space=smem, size = 0x400, scoped, tag = 'input window, operand 0, single buffered']
    #allocation3 [shape = 's32[2]{0}', space=sflag, size = 0x8, scoped, tag = 'scoped memory for tumor_size_specific_attention.1']
    %17 = vsyncpa [#allocation3], 0
    loop: start=0, step=1, limit=4
    $region2: #{tumor_size_specific_attention.1} parent=1 // loop_pre_header
      _
    $region3: #{tumor_size_specific_attention.1} parent=1 // loop_header
      %s19 = sphi 0, %s23
      %p20 = scmp.ge.s32.totalorder %s19, 4
      %s26 = sphi 0, %s38
      %s27 = sphi 0, %s34
      %s28 = sphi 0, %s26
      %s29 = sphi 0, %s27
      %s30 = sphi 0, %s28
      %s31 = sphi 0, %s29
      %s39 = sphi 0, %s39
      %s41 = sphi 0, %s39
      %s42 = sphi 0, %s41
      %s56 = sphi 0, %s42
      %s64 = sphi 0, %s66
      %s67 = sphi 0, %s64
      %s68 = sphi 0, %s67
      %s84 = sphi 0, %s68
      %s90 = sphi 0, %s92
      %s93 = sphi 0, %s90
      %s94 = sphi 0, %s93
      %s110 = sphi 0, %s94
      %s118 = sphi 0, %s120
      %s121 = sphi 0, %s118
      %s122 = sphi 0, %s121
      %s138 = sphi 0, %s122
      %s142 = sphi 0, %s142
      %s144 = sphi 0, %s142
      %s145 = sphi 0, %s144
      %s159 = sphi 0, %s145
      %s163 = sphi 0, %s163
      %s165 = sphi 0, %s163
      %s166 = sphi 0, %s165
      %s180 = sphi 0, %s166
      %s186 = sphi 0, %s188
      %s189 = sphi 0, %s186
      %s190 = sphi 0, %s189
      %s206 = sphi 0, %s190
      %s214 = sphi 0, %s216
      %s217 = sphi 0, %s214
      %s218 = sphi 0, %s217
      %s234 = sphi 0, %s218
      %s242 = sphi 0, %s244
      %s245 = sphi 0, %s242
      %s246 = sphi 0, %s245
      %s262 = sphi 0, %s246
      %s266 = sphi 0, %s266
      %s268 = sphi 0, %s266
      %s269 = sphi 0, %s268
      %s283 = sphi 0, %s269
      %s287 = sphi 0, %s287
      %s289 = sphi 0, %s287
      %s290 = sphi 0, %s289
      %s304 = sphi 0, %s290
      %s308 = sphi 0, %s308
      %s310 = sphi 0, %s308
      %s311 = sphi 0, %s310
      %s325 = sphi 0, %s311
      %s333 = sphi 0, %s335
      %s336 = sphi 0, %s333
      %s337 = sphi 0, %s336
      %s353 = sphi 0, %s337
    $region4: #{tumor_size_specific_attention.1} parent=1 // loop_header_branch
      %22 = sbr.rel (%p20) target = $region8
    $region5: #{tumor_size_specific_attention.1} parent=1 // loop_body
      %s24 = ssub.s32 %s19, 1
      %s25 = ssub.s32 %s19, 2
      %s32 = sadd.s32 1, %s27
      %p33 = scmp.ge.s32.totalorder %s32, 1
      %s34 = scalar_select %p33, 0, %s32
      %s35 = sadd.s32 1, %s26
      %s36 = scalar_select %p33, %s35, %s26
      %p37 = scmp.ge.s32.totalorder %s36, 2
      %s38 = scalar_select %p37, 0, %s36
      %s40 = sadd.s32 %s39, 1
      %p43 = scmp.eq.s32.totalorder %s19, 1
      %p44 = scmp.ne.s32.totalorder %s39, %s41
      %p45 = scmp.eq.s32.totalorder %s19, 0
      %p46 = por %p44, %p45
      %p47 = scmp.ne.s32.totalorder %s39, %s41
      %p48 = scmp.eq.s32.totalorder %s24, 1
      %p49 = por %p47, %p48
      %p50 = scmp.ne.s32.totalorder %s41, %s42
      %p51 = scmp.eq.s32.totalorder %s24, 0
      %p52 = por %p50, %p51
      %p53 = scmp.ne.s32.totalorder %s41, %s42
      %p54 = scmp.eq.s32.totalorder %s25, 1
      %p55 = por %p53, %p54
      %p57 = scmp.ne.s32.totalorder %s42, %s56
      %p58 = scmp.eq.s32.totalorder %s25, 0
      %p59 = por %p57, %p58
      %s60 = ssub.s32 %s26, %s38
      %s61 = ssub.s32 %s27, %s34
      %s62 = sor.u32 %s60, %s61
      %p63 = scmp.eq.s32.totalorder %s62, 0
      %s65 = sadd.s32 %s64, 1
      %s66 = scalar_select %p63, %s64, %s65
      %p69 = pneg %p63
      %p70 = scmp.eq.s32.totalorder %s19, 1
      %p71 = por %p69, %p70
      %p72 = scmp.ne.s32.totalorder %s64, %s67
      %p73 = scmp.eq.s32.totalorder %s19, 0
      %p74 = por %p72, %p73
      %p75 = scmp.ne.s32.totalorder %s64, %s67
      %p76 = scmp.eq.s32.totalorder %s24, 1
      %p77 = por %p75, %p76
      %p78 = scmp.ne.s32.totalorder %s67, %s68
      %p79 = scmp.eq.s32.totalorder %s24, 0
      %p80 = por %p78, %p79
      %p81 = scmp.ne.s32.totalorder %s67, %s68
      %p82 = scmp.eq.s32.totalorder %s25, 1
      %p83 = por %p81, %p82
      %p85 = scmp.ne.s32.totalorder %s68, %s84
      %p86 = scmp.eq.s32.totalorder %s25, 0
      %p87 = por %p85, %p86
      %s88 = ssub.s32 %s26, %s38
      %p89 = scmp.eq.s32.totalorder %s88, 0
      %s91 = sadd.s32 %s90, 1
      %s92 = scalar_select %p89, %s90, %s91
      %p95 = pneg %p89
      %p96 = scmp.eq.s32.totalorder %s19, 1
      %p97 = por %p95, %p96
      %p98 = scmp.ne.s32.totalorder %s90, %s93
      %p99 = scmp.eq.s32.totalorder %s19, 0
      %p100 = por %p98, %p99
      %p101 = scmp.ne.s32.totalorder %s90, %s93
      %p102 = scmp.eq.s32.totalorder %s24, 1
      %p103 = por %p101, %p102
      %p104 = scmp.ne.s32.totalorder %s93, %s94
      %p105 = scmp.eq.s32.totalorder %s24, 0
      %p106 = por %p104, %p105
      %p107 = scmp.ne.s32.totalorder %s93, %s94
      %p108 = scmp.eq.s32.totalorder %s25, 1
      %p109 = por %p107, %p108
      %p111 = scmp.ne.s32.totalorder %s94, %s110
      %p112 = scmp.eq.s32.totalorder %s25, 0
      %p113 = por %p111, %p112
      %s114 = ssub.s32 %s26, %s38
      %s115 = ssub.s32 %s27, %s34
      %s116 = sor.u32 %s114, %s115
      %p117 = scmp.eq.s32.totalorder %s116, 0
      %s119 = sadd.s32 %s118, 1
      %s120 = scalar_select %p117, %s118, %s119
      %p123 = pneg %p117
      %p124 = scmp.eq.s32.totalorder %s19, 1
      %p125 = por %p123, %p124
      %p126 = scmp.ne.s32.totalorder %s118, %s121
      %p127 = scmp.eq.s32.totalorder %s19, 0
      %p128 = por %p126, %p127
      %p129 = scmp.ne.s32.totalorder %s118, %s121
      %p130 = scmp.eq.s32.totalorder %s24, 1
      %p131 = por %p129, %p130
      %p132 = scmp.ne.s32.totalorder %s121, %s122
      %p133 = scmp.eq.s32.totalorder %s24, 0
      %p134 = por %p132, %p133
      %p135 = scmp.ne.s32.totalorder %s121, %s122
      %p136 = scmp.eq.s32.totalorder %s25, 1
      %p137 = por %p135, %p136
      %p139 = scmp.ne.s32.totalorder %s122, %s138
      %p140 = scmp.eq.s32.totalorder %s25, 0
      %p141 = por %p139, %p140
      %s143 = sadd.s32 %s142, 1
      %p146 = scmp.eq.s32.totalorder %s19, 1
      %p147 = scmp.ne.s32.totalorder %s142, %s144
      %p148 = scmp.eq.s32.totalorder %s19, 0
      %p149 = por %p147, %p148
      %p150 = scmp.ne.s32.totalorder %s142, %s144
      %p151 = scmp.eq.s32.totalorder %s24, 1
      %p152 = por %p150, %p151
      %p153 = scmp.ne.s32.totalorder %s144, %s145
      %p154 = scmp.eq.s32.totalorder %s24, 0
      %p155 = por %p153, %p154
      %p156 = scmp.ne.s32.totalorder %s144, %s145
      %p157 = scmp.eq.s32.totalorder %s25, 1
      %p158 = por %p156, %p157
      %p160 = scmp.ne.s32.totalorder %s145, %s159
      %p161 = scmp.eq.s32.totalorder %s25, 0
      %p162 = por %p160, %p161
      %s164 = sadd.s32 %s163, 1
      %p167 = scmp.eq.s32.totalorder %s19, 1
      %p168 = scmp.ne.s32.totalorder %s163, %s165
      %p169 = scmp.eq.s32.totalorder %s19, 0
      %p170 = por %p168, %p169
      %p171 = scmp.ne.s32.totalorder %s163, %s165
      %p172 = scmp.eq.s32.totalorder %s24, 1
      %p173 = por %p171, %p172
      %p174 = scmp.ne.s32.totalorder %s165, %s166
      %p175 = scmp.eq.s32.totalorder %s24, 0
      %p176 = por %p174, %p175
      %p177 = scmp.ne.s32.totalorder %s165, %s166
      %p178 = scmp.eq.s32.totalorder %s25, 1
      %p179 = por %p177, %p178
      %p181 = scmp.ne.s32.totalorder %s166, %s180
      %p182 = scmp.eq.s32.totalorder %s25, 0
      %p183 = por %p181, %p182
      %s184 = ssub.s32 %s26, %s38
      %p185 = scmp.eq.s32.totalorder %s184, 0
      %s187 = sadd.s32 %s186, 1
      %s188 = scalar_select %p185, %s186, %s187
      %p191 = pneg %p185
      %p192 = scmp.eq.s32.totalorder %s19, 1
      %p193 = por %p191, %p192
      %p194 = scmp.ne.s32.totalorder %s186, %s189
      %p195 = scmp.eq.s32.totalorder %s19, 0
      %p196 = por %p194, %p195
      %p197 = scmp.ne.s32.totalorder %s186, %s189
      %p198 = scmp.eq.s32.totalorder %s24, 1
      %p199 = por %p197, %p198
      %p200 = scmp.ne.s32.totalorder %s189, %s190
      %p201 = scmp.eq.s32.totalorder %s24, 0
      %p202 = por %p200, %p201
      %p203 = scmp.ne.s32.totalorder %s189, %s190
      %p204 = scmp.eq.s32.totalorder %s25, 1
      %p205 = por %p203, %p204
      %p207 = scmp.ne.s32.totalorder %s190, %s206
      %p208 = scmp.eq.s32.totalorder %s25, 0
      %p209 = por %p207, %p208
      %s210 = ssub.s32 %s26, %s38
      %s211 = ssub.s32 %s27, %s34
      %s212 = sor.u32 %s210, %s211
      %p213 = scmp.eq.s32.totalorder %s212, 0
      %s215 = sadd.s32 %s214, 1
      %s216 = scalar_select %p213, %s214, %s215
      %p219 = pneg %p213
      %p220 = scmp.eq.s32.totalorder %s19, 1
      %p221 = por %p219, %p220
      %p222 = scmp.ne.s32.totalorder %s214, %s217
      %p223 = scmp.eq.s32.totalorder %s19, 0
      %p224 = por %p222, %p223
      %p225 = scmp.ne.s32.totalorder %s214, %s217
      %p226 = scmp.eq.s32.totalorder %s24, 1
      %p227 = por %p225, %p226
      %p228 = scmp.ne.s32.totalorder %s217, %s218
      %p229 = scmp.eq.s32.totalorder %s24, 0
      %p230 = por %p228, %p229
      %p231 = scmp.ne.s32.totalorder %s217, %s218
      %p232 = scmp.eq.s32.totalorder %s25, 1
      %p233 = por %p231, %p232
      %p235 = scmp.ne.s32.totalorder %s218, %s234
      %p236 = scmp.eq.s32.totalorder %s25, 0
      %p237 = por %p235, %p236
      %s238 = ssub.s32 %s26, %s38
      %s239 = ssub.s32 %s27, %s34
      %s240 = sor.u32 %s238, %s239
      %p241 = scmp.eq.s32.totalorder %s240, 0
      %s243 = sadd.s32 %s242, 1
      %s244 = scalar_select %p241, %s242, %s243
      %p247 = pneg %p241
      %p248 = scmp.eq.s32.totalorder %s19, 1
      %p249 = por %p247, %p248
      %p250 = scmp.ne.s32.totalorder %s242, %s245
      %p251 = scmp.eq.s32.totalorder %s19, 0
      %p252 = por %p250, %p251
      %p253 = scmp.ne.s32.totalorder %s242, %s245
      %p254 = scmp.eq.s32.totalorder %s24, 1
      %p255 = por %p253, %p254
      %p256 = scmp.ne.s32.totalorder %s245, %s246
      %p257 = scmp.eq.s32.totalorder %s24, 0
      %p258 = por %p256, %p257
      %p259 = scmp.ne.s32.totalorder %s245, %s246
      %p260 = scmp.eq.s32.totalorder %s25, 1
      %p261 = por %p259, %p260
      %p263 = scmp.ne.s32.totalorder %s246, %s262
      %p264 = scmp.eq.s32.totalorder %s25, 0
      %p265 = por %p263, %p264
      %s267 = sadd.s32 %s266, 1
      %p270 = scmp.eq.s32.totalorder %s19, 1
      %p271 = scmp.ne.s32.totalorder %s266, %s268
      %p272 = scmp.eq.s32.totalorder %s19, 0
      %p273 = por %p271, %p272
      %p274 = scmp.ne.s32.totalorder %s266, %s268
      %p275 = scmp.eq.s32.totalorder %s24, 1
      %p276 = por %p274, %p275
      %p277 = scmp.ne.s32.totalorder %s268, %s269
      %p278 = scmp.eq.s32.totalorder %s24, 0
      %p279 = por %p277, %p278
      %p280 = scmp.ne.s32.totalorder %s268, %s269
      %p281 = scmp.eq.s32.totalorder %s25, 1
      %p282 = por %p280, %p281
      %p284 = scmp.ne.s32.totalorder %s269, %s283
      %p285 = scmp.eq.s32.totalorder %s25, 0
      %p286 = por %p284, %p285
      %s288 = sadd.s32 %s287, 1
      %p291 = scmp.eq.s32.totalorder %s19, 1
      %p292 = scmp.ne.s32.totalorder %s287, %s289
      %p293 = scmp.eq.s32.totalorder %s19, 0
      %p294 = por %p292, %p293
      %p295 = scmp.ne.s32.totalorder %s287, %s289
      %p296 = scmp.eq.s32.totalorder %s24, 1
      %p297 = por %p295, %p296
      %p298 = scmp.ne.s32.totalorder %s289, %s290
      %p299 = scmp.eq.s32.totalorder %s24, 0
      %p300 = por %p298, %p299
      %p301 = scmp.ne.s32.totalorder %s289, %s290
      %p302 = scmp.eq.s32.totalorder %s25, 1
      %p303 = por %p301, %p302
      %p305 = scmp.ne.s32.totalorder %s290, %s304
      %p306 = scmp.eq.s32.totalorder %s25, 0
      %p307 = por %p305, %p306
      %s309 = sadd.s32 %s308, 1
      %p312 = scmp.eq.s32.totalorder %s19, 1
      %p313 = scmp.ne.s32.totalorder %s308, %s310
      %p314 = scmp.eq.s32.totalorder %s19, 0
      %p315 = por %p313, %p314
      %p316 = scmp.ne.s32.totalorder %s308, %s310
      %p317 = scmp.eq.s32.totalorder %s24, 1
      %p318 = por %p316, %p317
      %p319 = scmp.ne.s32.totalorder %s310, %s311
      %p320 = scmp.eq.s32.totalorder %s24, 0
      %p321 = por %p319, %p320
      %p322 = scmp.ne.s32.totalorder %s310, %s311
      %p323 = scmp.eq.s32.totalorder %s25, 1
      %p324 = por %p322, %p323
      %p326 = scmp.ne.s32.totalorder %s311, %s325
      %p327 = scmp.eq.s32.totalorder %s25, 0
      %p328 = por %p326, %p327
      %s329 = ssub.s32 %s26, %s38
      %s330 = ssub.s32 %s27, %s34
      %s331 = sor.u32 %s329, %s330
      %p332 = scmp.eq.s32.totalorder %s331, 0
      %s334 = sadd.s32 %s333, 1
      %s335 = scalar_select %p332, %s333, %s334
      %p338 = pneg %p332
      %p339 = scmp.eq.s32.totalorder %s19, 1
      %p340 = por %p338, %p339
      %p341 = scmp.ne.s32.totalorder %s333, %s336
      %p342 = scmp.eq.s32.totalorder %s19, 0
      %p343 = por %p341, %p342
      %p344 = scmp.ne.s32.totalorder %s333, %s336
      %p345 = scmp.eq.s32.totalorder %s24, 1
      %p346 = por %p344, %p345
      %p347 = scmp.ne.s32.totalorder %s336, %s337
      %p348 = scmp.eq.s32.totalorder %s24, 0
      %p349 = por %p347, %p348
      %p350 = scmp.ne.s32.totalorder %s336, %s337
      %p351 = scmp.eq.s32.totalorder %s25, 1
      %p352 = por %p350, %p351
      %p354 = scmp.ne.s32.totalorder %s337, %s353
      %p355 = scmp.eq.s32.totalorder %s25, 0
      %p356 = por %p354, %p355
      %p357 = scmp.le.s32.totalorder 1, %s19
      %p358 = scmp.lt.s32.totalorder %s19, 3
      %p359 = pnand %p357, %p358
      %p360 = pneg %p359
      // Predicated region
      $region9: #{tumor_size_specific_attention.1} parent=5 // pred_check
        _
      $region10: #{tumor_size_specific_attention.1} parent=5 // pred_check_branch
        %362 = sbr.rel (%p359) target = $region12
      $region11: #{tumor_size_specific_attention.1} parent=5 // pred_region
        %s363 = ssub.s32 %s19, 1
        // Predicated region
        $region13: #{tumor_size_specific_attention.1} parent=11 // pred_check
          %p364 = pneg %p52
        $region14: #{tumor_size_specific_attention.1} parent=11 // pred_check_branch
          %366 = sbr.rel (%p364) target = $region16
        $region15: #{tumor_size_specific_attention.1} parent=11 // pred_region
          %368 = vsyncadd [#allocation3], 0
          %s370 = sshll.u32 %s0, 4
          %s371 = int_to_ptr.vmem [resolvable:$true] %s370
          %373 = dma.vmem_to_smem %s371, 32, [#allocation2], [#allocation3]
        $region16: #{tumor_size_specific_attention.1} parent=11 // pred_fallthru
          _
        // Predicated region
        $region17: #{tumor_size_specific_attention.1} parent=11 // pred_check
          %p374 = pneg %p155
        $region18: #{tumor_size_specific_attention.1} parent=11 // pred_check_branch
          %376 = sbr.rel (%p374) target = $region20
        $region19: #{tumor_size_specific_attention.1} parent=11 // pred_region
          _
        $region20: #{tumor_size_specific_attention.1} parent=11 // pred_fallthru
          _
        // Predicated region
        $region21: #{tumor_size_specific_attention.1} parent=11 // pred_check
          %p377 = pneg %p176
        $region22: #{tumor_size_specific_attention.1} parent=11 // pred_check_branch
          %379 = sbr.rel (%p377) target = $region24
        $region23: #{tumor_size_specific_attention.1} parent=11 // pred_region
          _
        $region24: #{tumor_size_specific_attention.1} parent=11 // pred_fallthru
          _
        // Predicated region
        $region25: #{tumor_size_specific_attention.1} parent=11 // pred_check
          %p380 = pneg %p279
        $region26: #{tumor_size_specific_attention.1} parent=11 // pred_check_branch
          %382 = sbr.rel (%p380) target = $region28
        $region27: #{tumor_size_specific_attention.1} parent=11 // pred_region
          _
        $region28: #{tumor_size_specific_attention.1} parent=11 // pred_fallthru
          _
        // Predicated region
        $region29: #{tumor_size_specific_attention.1} parent=11 // pred_check
          %p383 = pneg %p300
        $region30: #{tumor_size_specific_attention.1} parent=11 // pred_check_branch
          %385 = sbr.rel (%p383) target = $region32
        $region31: #{tumor_size_specific_attention.1} parent=11 // pred_region
          _
        $region32: #{tumor_size_specific_attention.1} parent=11 // pred_fallthru
          _
        // Predicated region
        $region33: #{tumor_size_specific_attention.1} parent=11 // pred_check
          %p386 = pneg %p321
        $region34: #{tumor_size_specific_attention.1} parent=11 // pred_check_branch
          %388 = sbr.rel (%p386) target = $region36
        $region35: #{tumor_size_specific_attention.1} parent=11 // pred_region
          _
        $region36: #{tumor_size_specific_attention.1} parent=11 // pred_fallthru
          _
      $region12: #{tumor_size_specific_attention.1} parent=5 // pred_fallthru
        _
      %p389 = scmp.lt.s32.totalorder %s19, 2
      // Predicated region
      $region37: #{tumor_size_specific_attention.1} parent=5 // pred_check
        %p390 = pneg %p389
      $region38: #{tumor_size_specific_attention.1} parent=5 // pred_check_branch
        %392 = sbr.rel (%p390) target = $region40
      $region39: #{tumor_size_specific_attention.1} parent=5 // pred_region
        // Predicated region
        $region41: #{tumor_size_specific_attention.1} parent=39 // pred_check
          %p393 = pneg %p74
        $region42: #{tumor_size_specific_attention.1} parent=39 // pred_check_branch
          %395 = sbr.rel (%p393) target = $region44
        $region43: #{tumor_size_specific_attention.1} parent=39 // pred_region
          %s396 = smul.u32 2, %s27
          %p397 = scmp.lt.s32.totalorder %s26, 1
          %s398 = scalar_select %p397, %s26, 1
          %p399 = scmp.lt.s32.totalorder %s396, 1
          %s400 = scalar_select %p399, %s396, 1
          %s401 = smul.addr %s398, 8
          %s402 = sadd.s32 %s400, %s401
          %s403 = smul.addr %s402, 8
          %s404 = scalar_lea.vmem %s1, %s403
          %s405 = smul.u32 2, %s27
        $region44: #{tumor_size_specific_attention.1} parent=39 // pred_fallthru
          _
        // Predicated region
        $region45: #{tumor_size_specific_attention.1} parent=39 // pred_check
          %p406 = pneg %p100
        $region46: #{tumor_size_specific_attention.1} parent=39 // pred_check_branch
          %408 = sbr.rel (%p406) target = $region48
        $region47: #{tumor_size_specific_attention.1} parent=39 // pred_region
          %p409 = scmp.lt.s32.totalorder %s26, 1
          %s410 = scalar_select %p409, %s26, 1
          %s411 = smul.addr %s410, 4
          %s412 = smul.addr %s411, 8
          %s413 = scalar_lea.vmem %s2, %s412
        $region48: #{tumor_size_specific_attention.1} parent=39 // pred_fallthru
          _
        // Predicated region
        $region49: #{tumor_size_specific_attention.1} parent=39 // pred_check
          %p414 = pneg %p128
        $region50: #{tumor_size_specific_attention.1} parent=39 // pred_check_branch
          %416 = sbr.rel (%p414) target = $region52
        $region51: #{tumor_size_specific_attention.1} parent=39 // pred_region
          %s417 = smul.u32 2, %s27
          %p418 = scmp.lt.s32.totalorder %s26, 1
          %s419 = scalar_select %p418, %s26, 1
          %p420 = scmp.lt.s32.totalorder %s417, 1
          %s421 = scalar_select %p420, %s417, 1
          %s422 = smul.addr %s419, 2
          %s423 = sadd.s32 %s421, %s422
          %s424 = scalar_lea.vmem %s3, %s423
          %s425 = smul.u32 2, %s27
        $region52: #{tumor_size_specific_attention.1} parent=39 // pred_fallthru
          _
        // Predicated region
        $region53: #{tumor_size_specific_attention.1} parent=39 // pred_check
          %p426 = pneg %p196
        $region54: #{tumor_size_specific_attention.1} parent=39 // pred_check_branch
          %428 = sbr.rel (%p426) target = $region56
        $region55: #{tumor_size_specific_attention.1} parent=39 // pred_region
          %p429 = scmp.lt.s32.totalorder %s26, 1
          %s430 = scalar_select %p429, %s26, 1
          %s431 = smul.addr %s430, 4
          %s432 = smul.addr %s431, 8
          %s433 = scalar_lea.vmem %s6, %s432
        $region56: #{tumor_size_specific_attention.1} parent=39 // pred_fallthru
          _
        // Predicated region
        $region57: #{tumor_size_specific_attention.1} parent=39 // pred_check
          %p434 = pneg %p224
        $region58: #{tumor_size_specific_attention.1} parent=39 // pred_check_branch
          %436 = sbr.rel (%p434) target = $region60
        $region59: #{tumor_size_specific_attention.1} parent=39 // pred_region
          %s437 = smul.u32 2, %s27
          %p438 = scmp.lt.s32.totalorder %s26, 1
          %s439 = scalar_select %p438, %s26, 1
          %p440 = scmp.lt.s32.totalorder %s437, 1
          %s441 = scalar_select %p440, %s437, 1
          %s442 = smul.addr %s439, 2
          %s443 = sadd.s32 %s441, %s442
          %s444 = scalar_lea.vmem %s7, %s443
          %s445 = smul.u32 2, %s27
        $region60: #{tumor_size_specific_attention.1} parent=39 // pred_fallthru
          _
        // Predicated region
        $region61: #{tumor_size_specific_attention.1} parent=39 // pred_check
          %p446 = pneg %p252
        $region62: #{tumor_size_specific_attention.1} parent=39 // pred_check_branch
          %448 = sbr.rel (%p446) target = $region64
        $region63: #{tumor_size_specific_attention.1} parent=39 // pred_region
          %s449 = smul.u32 2, %s27
          %p450 = scmp.lt.s32.totalorder %s26, 1
          %s451 = scalar_select %p450, %s26, 1
          %p452 = scmp.lt.s32.totalorder %s449, 1
          %s453 = scalar_select %p452, %s449, 1
          %s454 = smul.addr %s451, 2
          %s455 = sadd.s32 %s453, %s454
          %s456 = smul.addr %s455, 2
          %s457 = scalar_lea.vmem %s8, %s456
          %s458 = smul.u32 2, %s27
        $region64: #{tumor_size_specific_attention.1} parent=39 // pred_fallthru
          _
      $region40: #{tumor_size_specific_attention.1} parent=5 // pred_fallthru
        _
      %p459 = scmp.le.s32.totalorder 1, %s19
      %p460 = scmp.lt.s32.totalorder %s19, 3
      %p461 = pnand %p459, %p460
      %p462 = pneg %p461
      // Predicated region
      $region65: #{tumor_size_specific_attention.1} parent=5 // pred_check
        _
      $region66: #{tumor_size_specific_attention.1} parent=5 // pred_check_branch
        %464 = sbr.rel (%p461) target = $region68
      $region67: #{tumor_size_specific_attention.1} parent=5 // pred_region
        %s465 = ssub.s32 %s19, 1
        // Predicated region
        $region69: #{tumor_size_specific_attention.1} parent=67 // pred_check
          %p466 = pneg %p52
        $region70: #{tumor_size_specific_attention.1} parent=67 // pred_check_branch
          %468 = sbr.rel (%p466) target = $region72
        $region71: #{tumor_size_specific_attention.1} parent=67 // pred_region
          %470 = dma.done [#allocation3], 32
        $region72: #{tumor_size_specific_attention.1} parent=67 // pred_fallthru
          _
        %471 = sfence
        %p472 = pneg %p52
        %p473 = pneg %p49
        %s474 = smul.u32 2, %s29
        %p475 = scmp.lt.s32.totalorder %s28, 1
        %s476 = scalar_select %p475, %s28, 1
        %p477 = scmp.lt.s32.totalorder %s474, 1
        %s478 = scalar_select %p477, %s474, 1
        %s479 = smul.addr %s476, 8
        %s480 = sadd.s32 %s478, %s479
        %s481 = smul.addr %s480, 8
        %s482 = scalar_lea.vmem %s1, %s481
        %p483 = pneg %p80
        %p484 = pneg %p77
        %p485 = scmp.lt.s32.totalorder %s28, 1
        %s486 = scalar_select %p485, %s28, 1
        %s487 = smul.addr %s486, 4
        %s488 = smul.addr %s487, 8
        %s489 = scalar_lea.vmem %s2, %s488
        %p490 = pneg %p106
        %p491 = pneg %p103
        %s492 = smul.u32 2, %s29
        %p493 = scmp.lt.s32.totalorder %s28, 1
        %s494 = scalar_select %p493, %s28, 1
        %p495 = scmp.lt.s32.totalorder %s492, 1
        %s496 = scalar_select %p495, %s492, 1
        %s497 = smul.addr %s494, 2
        %s498 = sadd.s32 %s496, %s497
        %s499 = scalar_lea.vmem %s3, %s498
        %p500 = pneg %p134
        %p501 = pneg %p131
        %p502 = pneg %p155
        %p503 = pneg %p152
        %p504 = pneg %p176
        %p505 = pneg %p173
        %p506 = scmp.lt.s32.totalorder %s28, 1
        %s507 = scalar_select %p506, %s28, 1
        %s508 = smul.addr %s507, 4
        %s509 = smul.addr %s508, 8
        %s510 = scalar_lea.vmem %s6, %s509
        %p511 = pneg %p202
        %p512 = pneg %p199
        %s513 = smul.u32 2, %s29
        %p514 = scmp.lt.s32.totalorder %s28, 1
        %s515 = scalar_select %p514, %s28, 1
        %p516 = scmp.lt.s32.totalorder %s513, 1
        %s517 = scalar_select %p516, %s513, 1
        %s518 = smul.addr %s515, 2
        %s519 = sadd.s32 %s517, %s518
        %s520 = scalar_lea.vmem %s7, %s519
        %p521 = pneg %p230
        %p522 = pneg %p227
        %s523 = smul.u32 2, %s29
        %p524 = scmp.lt.s32.totalorder %s28, 1
        %s525 = scalar_select %p524, %s28, 1
        %p526 = scmp.lt.s32.totalorder %s523, 1
        %s527 = scalar_select %p526, %s523, 1
        %s528 = smul.addr %s525, 2
        %s529 = sadd.s32 %s527, %s528
        %s530 = smul.addr %s529, 2
        %s531 = scalar_lea.vmem %s8, %s530
        %p532 = pneg %p258
        %p533 = pneg %p255
        %p534 = pneg %p279
        %p535 = pneg %p276
        %p536 = pneg %p300
        %p537 = pneg %p297
        %p538 = pneg %p321
        %p539 = pneg %p318
        %p540 = pneg %p349
        %p541 = pneg %p346
        %s542 = smul.u32 2, %s29
        %p543 = scmp.lt.s32.totalorder %s28, 1
        %s544 = scalar_select %p543, %s28, 1
        %p545 = scmp.lt.s32.totalorder %s542, 1
        %s546 = scalar_select %p545, %s542, 1
        %s547 = smul.addr %s544, 8
        %s548 = sadd.s32 %s546, %s547
        %s549 = smul.addr %s548, 8
        %s550 = scalar_lea.vmem %s12, %s549
        %s551 = smul.u32 2, %s29
        %p552 = scmp.lt.s32.totalorder %s28, 1
        %s553 = scalar_select %p552, %s28, 1
        %p554 = scmp.lt.s32.totalorder %s551, 1
        %s555 = scalar_select %p554, %s551, 1
        %s556 = smul.addr %s553, 8
        %s557 = sadd.s32 %s555, %s556
        %s558 = smul.addr %s557, 8
        %s559 = scalar_lea.vmem %s1, %s558
        %s560 = smul.u32 2, %s29
        %p561 = scmp.lt.s32.totalorder %s28, 1
        %s562 = scalar_select %p561, %s28, 1
        %s563 = smul.addr %s562, 4
        %s564 = smul.addr %s563, 8
        %s565 = scalar_lea.vmem %s2, %s564
        %s566 = smul.u32 2, %s29
        %p567 = scmp.lt.s32.totalorder %s28, 1
        %s568 = scalar_select %p567, %s28, 1
        %p569 = scmp.lt.s32.totalorder %s566, 1
        %s570 = scalar_select %p569, %s566, 1
        %s571 = smul.addr %s568, 2
        %s572 = sadd.s32 %s570, %s571
        %s573 = scalar_lea.vmem %s3, %s572
        %s574 = smul.u32 2, %s29
        %p575 = scmp.lt.s32.totalorder %s28, 1
        %s576 = scalar_select %p575, %s28, 1
        %s577 = smul.addr %s576, 4
        %s578 = smul.addr %s577, 8
        %s579 = scalar_lea.vmem %s6, %s578
        %s580 = smul.u32 2, %s29
        %p581 = scmp.lt.s32.totalorder %s28, 1
        %s582 = scalar_select %p581, %s28, 1
        %p583 = scmp.lt.s32.totalorder %s580, 1
        %s584 = scalar_select %p583, %s580, 1
        %s585 = smul.addr %s582, 2
        %s586 = sadd.s32 %s584, %s585
        %s587 = scalar_lea.vmem %s7, %s586
        %s588 = smul.u32 2, %s29
        %s589 = smul.u32 2, %s29
        %p590 = scmp.lt.s32.totalorder %s28, 1
        %s591 = scalar_select %p590, %s28, 1
        %p592 = scmp.lt.s32.totalorder %s589, 1
        %s593 = scalar_select %p592, %s589, 1
        %s594 = smul.addr %s591, 2
        %s595 = sadd.s32 %s593, %s594
        %s596 = smul.addr %s595, 2
        %s597 = scalar_lea.vmem %s8, %s596
        %s598 = smul.u32 2, %s29
        %s599 = smul.u32 2, %s29
        %p600 = scmp.lt.s32.totalorder %s28, 1
        %s601 = scalar_select %p600, %s28, 1
        %p602 = scmp.lt.s32.totalorder %s599, 1
        %s603 = scalar_select %p602, %s599, 1
        %s604 = smul.addr %s601, 8
        %s605 = sadd.s32 %s603, %s604
        %s606 = smul.addr %s605, 8
        %s607 = scalar_lea.vmem %s12, %s606
        %s608 = smul.u32 2, %s29
        %s609 = smul.u32 %s28, 128
        %s610 = sld [smem:[#allocation2 + %s609]]
        %s611 = sadd.s32 %s609, 1
        %s612 = sld [smem:[#allocation2 + %s611]]
        %v613 = vld [vmem:[%s559] sm:$0xff]
        %v614 = vld [vmem:[%s559 + $0x8] sm:$0xff]
        %v615 = vld [vmem:[%s559 + $0x10] sm:$0xff]
        %v616 = vld [vmem:[%s559 + $0x18] sm:$0xff]
        %v617 = vld [vmem:[%s559 + $0x20] sm:$0xff]
        %v618 = vld [vmem:[%s559 + $0x28] sm:$0xff]
        %v619 = vld [vmem:[%s559 + $0x30] sm:$0xff]
        %v620 = vld [vmem:[%s559 + $0x38] sm:$0xff]
        %v621 = vld [vmem:[%s565] sm:$0xff]
        %v622 = vld [vmem:[%s565 + $0x8] sm:$0xff]
        %v623 = vld [vmem:[%s565 + $0x10] sm:$0xff]
        %v624 = vld [vmem:[%s565 + $0x18] sm:$0xff]
        %v625 = vld [vmem:[%s573] sm:$0x3]
        %627 = vset.pattern.permute.xlu0 0
        %628 = vperm.xlu0 %627, %v621
        %v629 = vpop.permute.xlu0 %628
        %632 = vset.pattern.permute.xlu0 0
        %633 = vperm.xlu0 %632, %v622
        %v634 = vpop.permute.xlu0 %633
        %637 = vset.pattern.permute.xlu0 0
        %638 = vperm.xlu0 %637, %v623
        %v639 = vpop.permute.xlu0 %638
        %642 = vset.pattern.permute.xlu0 0
        %643 = vperm.xlu0 %642, %v624
        %v644 = vpop.permute.xlu0 %643
        %v647 = vperm.slane %v625, 0
        %v648 = vperm.slane %v625, 1
        %v651 = vadd.f32 %v629, %v647
        %v652 = vadd.f32 %v629, %v648
        %v653 = vadd.f32 %v634, %v647
        %v654 = vadd.f32 %v634, %v648
        %v655 = vadd.f32 %v639, %v647
        %v656 = vadd.f32 %v639, %v648
        %v657 = vadd.f32 %v644, %v647
        %v658 = vadd.f32 %v644, %v648
        %v659 = vmul.f32 %v613, %v651
        %v660 = vmul.f32 %v614, %v652
        %v661 = vmul.f32 %v615, %v653
        %v662 = vmul.f32 %v616, %v654
        %v663 = vmul.f32 %v617, %v655
        %v664 = vmul.f32 %v618, %v656
        %v665 = vmul.f32 %v619, %v657
        %v666 = vmul.f32 %v620, %v658
        %v667 = vld [vmem:[%s4] sm:$0xff]
        %v668 = vld [vmem:[%s4 + $0x8] sm:$0xff]
        %v669 = vld [vmem:[%s4 + $0x10] sm:$0xff]
        %v670 = vld [vmem:[%s4 + $0x18] sm:$0xff]
        %v671 = vld [vmem:[%s5] sm:$0xff]
        %v672 = vld [vmem:[%s5 + $0x8] sm:$0xff]
        %v673 = vld [vmem:[%s5 + $0x10] sm:$0xff]
        %v674 = vld [vmem:[%s5 + $0x18] sm:$0xff]
        %676 = vset.pattern.permute.xlu0 0
        %677 = vperm.xlu0 %676, %v671
        %v678 = vpop.permute.xlu0 %677
        %681 = vset.pattern.permute.xlu0 0
        %682 = vperm.xlu0 %681, %v672
        %v683 = vpop.permute.xlu0 %682
        %686 = vset.pattern.permute.xlu0 0
        %687 = vperm.xlu0 %686, %v673
        %v688 = vpop.permute.xlu0 %687
        %691 = vset.pattern.permute.xlu0 0
        %692 = vperm.xlu0 %691, %v674
        %v693 = vpop.permute.xlu0 %692
        %vm695 = vcmask 261120
        %v697 = vsel %vm695, %v667, 0
        %v700 = vsel %vm695, %v668, 0
        %v703 = vsel %vm695, %v669, 0
        %v706 = vsel %vm695, %v670, 0
        %708 = vmatpush.msra.mxu0 0.0
        %709 = vmatpush.msra.mxu0 0.0
        %710 = vmatpush.msra.mxu0 0.0
        %711 = vmatpush.msra.mxu0 0.0
        %712 = vmatpush.msra.mxu0 0.0
        %713 = vmatpush.msra.mxu0 0.0
        %714 = vmatpush.msra.mxu0 0.0
        %715 = vmatpush.msra.mxu0 0.0
        %716 = vmatpush.msra.mxu0 0.0
        %717 = vmatpush.msra.mxu0 0.0
        %718 = vmatpush.msra.mxu0 0.0
        %719 = vmatpush.msra.mxu0 0.0
        %720 = vmatpush.msra.mxu0 %v665
        %721 = vmatpush.msra.mxu0 %v663
        %722 = vmatpush.msra.mxu0 %v661
        %723 = vmatpush.msra.mxu0 %v659
        %724 = vmatmul.f32.gmra.mxu0 %v697
        %v725 = vpop.f32.mrf.mxu0
        %v726 = vadd.f32 %v678, %v725
        %727 = vmatmul.f32.gmra.mxu0 %v700
        %v728 = vpop.f32.mrf.mxu0
        %v729 = vadd.f32 %v683, %v728
        %730 = vmatmul.f32.gmra.mxu0 %v703
        %v731 = vpop.f32.mrf.mxu0
        %v732 = vadd.f32 %v688, %v731
        %733 = vmatmul.f32.gmra.mxu0 %v706
        %v734 = vpop.f32.mrf.mxu0
        %v735 = vadd.f32 %v693, %v734
        %736 = vdwg.mxu0
        %737 = vmatpush.msra.mxu0 0.0
        %738 = vmatpush.msra.mxu0 0.0
        %739 = vmatpush.msra.mxu0 0.0
        %740 = vmatpush.msra.mxu0 0.0
        %741 = vmatpush.msra.mxu0 0.0
        %742 = vmatpush.msra.mxu0 0.0
        %743 = vmatpush.msra.mxu0 0.0
        %744 = vmatpush.msra.mxu0 0.0
        %745 = vmatpush.msra.mxu0 0.0
        %746 = vmatpush.msra.mxu0 0.0
        %747 = vmatpush.msra.mxu0 0.0
        %748 = vmatpush.msra.mxu0 0.0
        %749 = vmatpush.msra.mxu0 %v666
        %750 = vmatpush.msra.mxu0 %v664
        %751 = vmatpush.msra.mxu0 %v662
        %752 = vmatpush.msra.mxu0 %v660
        %753 = vmatmul.f32.gmra.mxu0 %v697
        %v754 = vpop.f32.mrf.mxu0
        %v755 = vadd.f32 %v678, %v754
        %756 = vmatmul.f32.gmra.mxu0 %v700
        %v757 = vpop.f32.mrf.mxu0
        %v758 = vadd.f32 %v683, %v757
        %759 = vmatmul.f32.gmra.mxu0 %v703
        %v760 = vpop.f32.mrf.mxu0
        %v761 = vadd.f32 %v688, %v760
        %762 = vmatmul.f32.gmra.mxu0 %v706
        %v763 = vpop.f32.mrf.mxu0
        %v764 = vadd.f32 %v693, %v763
        %765 = vdwg.mxu0
        %v766 = vxor.u32 %v726, 2147483648
        %v767 = vxor.u32 %v755, 2147483648
        %v768 = vxor.u32 %v729, 2147483648
        %v769 = vxor.u32 %v758, 2147483648
        %v770 = vxor.u32 %v732, 2147483648
        %v771 = vxor.u32 %v761, 2147483648
        %v772 = vxor.u32 %v735, 2147483648
        %v773 = vxor.u32 %v764, 2147483648
        %v774 = vmul.f32 %v766, 1.442695
        %v775 = vpow.pop %v774
        %v776 = vmul.f32 %v767, 1.442695
        %v777 = vpow.pop %v776
        %v778 = vmul.f32 %v768, 1.442695
        %v779 = vpow.pop %v778
        %v780 = vmul.f32 %v769, 1.442695
        %v781 = vpow.pop %v780
        %v782 = vmul.f32 %v770, 1.442695
        %v783 = vpow.pop %v782
        %v784 = vmul.f32 %v771, 1.442695
        %v785 = vpow.pop %v784
        %v786 = vmul.f32 %v772, 1.442695
        %v787 = vpow.pop %v786
        %v788 = vmul.f32 %v773, 1.442695
        %v789 = vpow.pop %v788
        %v790 = vadd.f32 %v775, 1.0
        %v791 = vadd.f32 %v777, 1.0
        %v792 = vadd.f32 %v779, 1.0
        %v793 = vadd.f32 %v781, 1.0
        %v794 = vadd.f32 %v783, 1.0
        %v795 = vadd.f32 %v785, 1.0
        %v796 = vadd.f32 %v787, 1.0
        %v797 = vadd.f32 %v789, 1.0
        %v798 = vrcp.pop %v790
        %v799 = vmul.f32 %v790, %v798
        %v800 = vsub.f32 1.0, %v799
        %v801 = vmul.f32 %v798, %v800
        %v802 = vadd.f32 %v798, %v801
        %vm803 = vweird.f32 %v790
        %vm804 = vweird.f32 %v798
        %vm805 = vmor %vm803, %vm804
        %v806 = vsel %vm805, %v798, %v802
        %v807 = vand.u32 2147483647, %v790
        %vm808 = vcmp.eq.f32.partialorder %v807, 8.507059e+37
        %v809 = vand.u32 %v790, 2147483648
        %v810 = vor.u32 1.1754944e-38, %v809
        %v811 = vsel %vm808, %v810, %v806
        %v812 = vmul.f32 1.0, %v811
        %v813 = vrcp.pop %v791
        %v814 = vmul.f32 %v791, %v813
        %v815 = vsub.f32 1.0, %v814
        %v816 = vmul.f32 %v813, %v815
        %v817 = vadd.f32 %v813, %v816
        %vm818 = vweird.f32 %v791
        %vm819 = vweird.f32 %v813
        %vm820 = vmor %vm818, %vm819
        %v821 = vsel %vm820, %v813, %v817
        %v822 = vand.u32 2147483647, %v791
        %vm823 = vcmp.eq.f32.partialorder %v822, 8.507059e+37
        %v824 = vand.u32 %v791, 2147483648
        %v825 = vor.u32 1.1754944e-38, %v824
        %v826 = vsel %vm823, %v825, %v821
        %v827 = vmul.f32 1.0, %v826
        %v828 = vrcp.pop %v792
        %v829 = vmul.f32 %v792, %v828
        %v830 = vsub.f32 1.0, %v829
        %v831 = vmul.f32 %v828, %v830
        %v832 = vadd.f32 %v828, %v831
        %vm833 = vweird.f32 %v792
        %vm834 = vweird.f32 %v828
        %vm835 = vmor %vm833, %vm834
        %v836 = vsel %vm835, %v828, %v832
        %v837 = vand.u32 2147483647, %v792
        %vm838 = vcmp.eq.f32.partialorder %v837, 8.507059e+37
        %v839 = vand.u32 %v792, 2147483648
        %v840 = vor.u32 1.1754944e-38, %v839
        %v841 = vsel %vm838, %v840, %v836
        %v842 = vmul.f32 1.0, %v841
        %v843 = vrcp.pop %v793
        %v844 = vmul.f32 %v793, %v843
        %v845 = vsub.f32 1.0, %v844
        %v846 = vmul.f32 %v843, %v845
        %v847 = vadd.f32 %v843, %v846
        %vm848 = vweird.f32 %v793
        %vm849 = vweird.f32 %v843
        %vm850 = vmor %vm848, %vm849
        %v851 = vsel %vm850, %v843, %v847
        %v852 = vand.u32 2147483647, %v793
        %vm853 = vcmp.eq.f32.partialorder %v852, 8.507059e+37
        %v854 = vand.u32 %v793, 2147483648
        %v855 = vor.u32 1.1754944e-38, %v854
        %v856 = vsel %vm853, %v855, %v851
        %v857 = vmul.f32 1.0, %v856
        %v858 = vrcp.pop %v794
        %v859 = vmul.f32 %v794, %v858
        %v860 = vsub.f32 1.0, %v859
        %v861 = vmul.f32 %v858, %v860
        %v862 = vadd.f32 %v858, %v861
        %vm863 = vweird.f32 %v794
        %vm864 = vweird.f32 %v858
        %vm865 = vmor %vm863, %vm864
        %v866 = vsel %vm865, %v858, %v862
        %v867 = vand.u32 2147483647, %v794
        %vm868 = vcmp.eq.f32.partialorder %v867, 8.507059e+37
        %v869 = vand.u32 %v794, 2147483648
        %v870 = vor.u32 1.1754944e-38, %v869
        %v871 = vsel %vm868, %v870, %v866
        %v872 = vmul.f32 1.0, %v871
        %v873 = vrcp.pop %v795
        %v874 = vmul.f32 %v795, %v873
        %v875 = vsub.f32 1.0, %v874
        %v876 = vmul.f32 %v873, %v875
        %v877 = vadd.f32 %v873, %v876
        %vm878 = vweird.f32 %v795
        %vm879 = vweird.f32 %v873
        %vm880 = vmor %vm878, %vm879
        %v881 = vsel %vm880, %v873, %v877
        %v882 = vand.u32 2147483647, %v795
        %vm883 = vcmp.eq.f32.partialorder %v882, 8.507059e+37
        %v884 = vand.u32 %v795, 2147483648
        %v885 = vor.u32 1.1754944e-38, %v884
        %v886 = vsel %vm883, %v885, %v881
        %v887 = vmul.f32 1.0, %v886
        %v888 = vrcp.pop %v796
        %v889 = vmul.f32 %v796, %v888
        %v890 = vsub.f32 1.0, %v889
        %v891 = vmul.f32 %v888, %v890
        %v892 = vadd.f32 %v888, %v891
        %vm893 = vweird.f32 %v796
        %vm894 = vweird.f32 %v888
        %vm895 = vmor %vm893, %vm894
        %v896 = vsel %vm895, %v888, %v892
        %v897 = vand.u32 2147483647, %v796
        %vm898 = vcmp.eq.f32.partialorder %v897, 8.507059e+37
        %v899 = vand.u32 %v796, 2147483648
        %v900 = vor.u32 1.1754944e-38, %v899
        %v901 = vsel %vm898, %v900, %v896
        %v902 = vmul.f32 1.0, %v901
        %v903 = vrcp.pop %v797
        %v904 = vmul.f32 %v797, %v903
        %v905 = vsub.f32 1.0, %v904
        %v906 = vmul.f32 %v903, %v905
        %v907 = vadd.f32 %v903, %v906
        %vm908 = vweird.f32 %v797
        %vm909 = vweird.f32 %v903
        %vm910 = vmor %vm908, %vm909
        %v911 = vsel %vm910, %v903, %v907
        %v912 = vand.u32 2147483647, %v797
        %vm913 = vcmp.eq.f32.partialorder %v912, 8.507059e+37
        %v914 = vand.u32 %v797, 2147483648
        %v915 = vor.u32 1.1754944e-38, %v914
        %v916 = vsel %vm913, %v915, %v911
        %v917 = vmul.f32 1.0, %v916
        %v918 = vld [vmem:[%s597] sm:$0xf]
        %v919 = vld [vmem:[%s9] sm:$0x3]
        %921 = vset.pattern.permute.xlu0 0
        %922 = vperm.xlu0 %921, %v919
        %v923 = vpop.permute.xlu0 %922
        %v925 = vunpack.c.l.s4 269488144
        %v926 = vunpack.c.0.s8 %v925
        %v927 = vperm.slane %v923, %v926
        %v929 = vadd.f32 %v918, %v927
        %v930 = vmax.f32 %v929, 0.0
        %v931 = vld [vmem:[%s10] sm:$0xff]
        %v932 = vld [vmem:[%s10 + $0x8] sm:$0xff]
        %v933 = vld [vmem:[%s10 + $0x10] sm:$0xff]
        %v934 = vld [vmem:[%s10 + $0x18] sm:$0xff]
        %936 = vset.pattern.permute.xlu0 0
        %937 = vperm.xlu0 %936, %v931
        %v938 = vpop.permute.xlu0 %937
        %941 = vset.pattern.permute.xlu0 0
        %942 = vperm.xlu0 %941, %v932
        %v943 = vpop.permute.xlu0 %942
        %946 = vset.pattern.permute.xlu0 0
        %947 = vperm.xlu0 %946, %v933
        %v948 = vpop.permute.xlu0 %947
        %951 = vset.pattern.permute.xlu0 0
        %952 = vperm.xlu0 %951, %v934
        %v953 = vpop.permute.xlu0 %952
        %v956 = vperm.slane %v930, 0
        %v957 = vperm.slane %v930, 2
        %v960 = vperm.slane %v956, 0
        %v961 = vperm.slane %v957, 0
        %v962 = vmul.f32 %v938, %v960
        %v963 = vmul.f32 %v938, %v961
        %v964 = vmul.f32 %v943, %v960
        %v965 = vmul.f32 %v943, %v961
        %v966 = vmul.f32 %v948, %v960
        %v967 = vmul.f32 %v948, %v961
        %v968 = vmul.f32 %v953, %v960
        %v969 = vmul.f32 %v953, %v961
        %970 = vset.pattern.permute.xlu0 1
        %971 = vperm.xlu0 %970, %v931
        %v972 = vpop.permute.xlu0 %971
        %974 = vset.pattern.permute.xlu0 1
        %975 = vperm.xlu0 %974, %v932
        %v976 = vpop.permute.xlu0 %975
        %978 = vset.pattern.permute.xlu0 1
        %979 = vperm.xlu0 %978, %v933
        %v980 = vpop.permute.xlu0 %979
        %982 = vset.pattern.permute.xlu0 1
        %983 = vperm.xlu0 %982, %v934
        %v984 = vpop.permute.xlu0 %983
        %v986 = vperm.slane %v930, 1
        %v987 = vperm.slane %v930, 3
        %v990 = vperm.slane %v986, 1
        %v991 = vperm.slane %v987, 1
        %v992 = vmul.f32 %v972, %v990
        %v993 = vmul.f32 %v972, %v991
        %v994 = vmul.f32 %v976, %v990
        %v995 = vmul.f32 %v976, %v991
        %v996 = vmul.f32 %v980, %v990
        %v997 = vmul.f32 %v980, %v991
        %v998 = vmul.f32 %v984, %v990
        %v999 = vmul.f32 %v984, %v991
        %v1000 = vadd.f32 %v962, %v992
        %v1001 = vadd.f32 %v963, %v993
        %v1002 = vadd.f32 %v964, %v994
        %v1003 = vadd.f32 %v965, %v995
        %v1004 = vadd.f32 %v966, %v996
        %v1005 = vadd.f32 %v967, %v997
        %v1006 = vadd.f32 %v968, %v998
        %v1007 = vadd.f32 %v969, %v999
        %v1008 = vld [vmem:[%s11] sm:$0xff]
        %v1009 = vld [vmem:[%s11 + $0x8] sm:$0xff]
        %v1010 = vld [vmem:[%s11 + $0x10] sm:$0xff]
        %v1011 = vld [vmem:[%s11 + $0x18] sm:$0xff]
        %1013 = vset.pattern.permute.xlu0 0
        %1014 = vperm.xlu0 %1013, %v1008
        %v1015 = vpop.permute.xlu0 %1014
        %1018 = vset.pattern.permute.xlu0 0
        %1019 = vperm.xlu0 %1018, %v1009
        %v1020 = vpop.permute.xlu0 %1019
        %1023 = vset.pattern.permute.xlu0 0
        %1024 = vperm.xlu0 %1023, %v1010
        %v1025 = vpop.permute.xlu0 %1024
        %1028 = vset.pattern.permute.xlu0 0
        %1029 = vperm.xlu0 %1028, %v1011
        %v1030 = vpop.permute.xlu0 %1029
        %v1032 = vadd.f32 %v1000, %v1015
        %v1033 = vadd.f32 %v1001, %v1015
        %v1034 = vadd.f32 %v1002, %v1020
        %v1035 = vadd.f32 %v1003, %v1020
        %v1036 = vadd.f32 %v1004, %v1025
        %v1037 = vadd.f32 %v1005, %v1025
        %v1038 = vadd.f32 %v1006, %v1030
        %v1039 = vadd.f32 %v1007, %v1030
        %v1040 = vxor.u32 %v1032, 2147483648
        %v1041 = vxor.u32 %v1033, 2147483648
        %v1042 = vxor.u32 %v1034, 2147483648
        %v1043 = vxor.u32 %v1035, 2147483648
        %v1044 = vxor.u32 %v1036, 2147483648
        %v1045 = vxor.u32 %v1037, 2147483648
        %v1046 = vxor.u32 %v1038, 2147483648
        %v1047 = vxor.u32 %v1039, 2147483648
        %v1048 = vmul.f32 %v1040, 1.442695
        %v1049 = vpow.pop %v1048
        %v1050 = vmul.f32 %v1041, 1.442695
        %v1051 = vpow.pop %v1050
        %v1052 = vmul.f32 %v1042, 1.442695
        %v1053 = vpow.pop %v1052
        %v1054 = vmul.f32 %v1043, 1.442695
        %v1055 = vpow.pop %v1054
        %v1056 = vmul.f32 %v1044, 1.442695
        %v1057 = vpow.pop %v1056
        %v1058 = vmul.f32 %v1045, 1.442695
        %v1059 = vpow.pop %v1058
        %v1060 = vmul.f32 %v1046, 1.442695
        %v1061 = vpow.pop %v1060
        %v1062 = vmul.f32 %v1047, 1.442695
        %v1063 = vpow.pop %v1062
        %v1064 = vadd.f32 %v1049, 1.0
        %v1065 = vadd.f32 %v1051, 1.0
        %v1066 = vadd.f32 %v1053, 1.0
        %v1067 = vadd.f32 %v1055, 1.0
        %v1068 = vadd.f32 %v1057, 1.0
        %v1069 = vadd.f32 %v1059, 1.0
        %v1070 = vadd.f32 %v1061, 1.0
        %v1071 = vadd.f32 %v1063, 1.0
        %v1072 = vrcp.pop %v1064
        %v1073 = vmul.f32 %v1064, %v1072
        %v1074 = vsub.f32 1.0, %v1073
        %v1075 = vmul.f32 %v1072, %v1074
        %v1076 = vadd.f32 %v1072, %v1075
        %vm1077 = vweird.f32 %v1064
        %vm1078 = vweird.f32 %v1072
        %vm1079 = vmor %vm1077, %vm1078
        %v1080 = vsel %vm1079, %v1072, %v1076
        %v1081 = vand.u32 2147483647, %v1064
        %vm1082 = vcmp.eq.f32.partialorder %v1081, 8.507059e+37
        %v1083 = vand.u32 %v1064, 2147483648
        %v1084 = vor.u32 1.1754944e-38, %v1083
        %v1085 = vsel %vm1082, %v1084, %v1080
        %v1086 = vmul.f32 1.0, %v1085
        %v1087 = vrcp.pop %v1065
        %v1088 = vmul.f32 %v1065, %v1087
        %v1089 = vsub.f32 1.0, %v1088
        %v1090 = vmul.f32 %v1087, %v1089
        %v1091 = vadd.f32 %v1087, %v1090
        %vm1092 = vweird.f32 %v1065
        %vm1093 = vweird.f32 %v1087
        %vm1094 = vmor %vm1092, %vm1093
        %v1095 = vsel %vm1094, %v1087, %v1091
        %v1096 = vand.u32 2147483647, %v1065
        %vm1097 = vcmp.eq.f32.partialorder %v1096, 8.507059e+37
        %v1098 = vand.u32 %v1065, 2147483648
        %v1099 = vor.u32 1.1754944e-38, %v1098
        %v1100 = vsel %vm1097, %v1099, %v1095
        %v1101 = vmul.f32 1.0, %v1100
        %v1102 = vrcp.pop %v1066
        %v1103 = vmul.f32 %v1066, %v1102
        %v1104 = vsub.f32 1.0, %v1103
        %v1105 = vmul.f32 %v1102, %v1104
        %v1106 = vadd.f32 %v1102, %v1105
        %vm1107 = vweird.f32 %v1066
        %vm1108 = vweird.f32 %v1102
        %vm1109 = vmor %vm1107, %vm1108
        %v1110 = vsel %vm1109, %v1102, %v1106
        %v1111 = vand.u32 2147483647, %v1066
        %vm1112 = vcmp.eq.f32.partialorder %v1111, 8.507059e+37
        %v1113 = vand.u32 %v1066, 2147483648
        %v1114 = vor.u32 1.1754944e-38, %v1113
        %v1115 = vsel %vm1112, %v1114, %v1110
        %v1116 = vmul.f32 1.0, %v1115
        %v1117 = vrcp.pop %v1067
        %v1118 = vmul.f32 %v1067, %v1117
        %v1119 = vsub.f32 1.0, %v1118
        %v1120 = vmul.f32 %v1117, %v1119
        %v1121 = vadd.f32 %v1117, %v1120
        %vm1122 = vweird.f32 %v1067
        %vm1123 = vweird.f32 %v1117
        %vm1124 = vmor %vm1122, %vm1123
        %v1125 = vsel %vm1124, %v1117, %v1121
        %v1126 = vand.u32 2147483647, %v1067
        %vm1127 = vcmp.eq.f32.partialorder %v1126, 8.507059e+37
        %v1128 = vand.u32 %v1067, 2147483648
        %v1129 = vor.u32 1.1754944e-38, %v1128
        %v1130 = vsel %vm1127, %v1129, %v1125
        %v1131 = vmul.f32 1.0, %v1130
        %v1132 = vrcp.pop %v1068
        %v1133 = vmul.f32 %v1068, %v1132
        %v1134 = vsub.f32 1.0, %v1133
        %v1135 = vmul.f32 %v1132, %v1134
        %v1136 = vadd.f32 %v1132, %v1135
        %vm1137 = vweird.f32 %v1068
        %vm1138 = vweird.f32 %v1132
        %vm1139 = vmor %vm1137, %vm1138
        %v1140 = vsel %vm1139, %v1132, %v1136
        %v1141 = vand.u32 2147483647, %v1068
        %vm1142 = vcmp.eq.f32.partialorder %v1141, 8.507059e+37
        %v1143 = vand.u32 %v1068, 2147483648
        %v1144 = vor.u32 1.1754944e-38, %v1143
        %v1145 = vsel %vm1142, %v1144, %v1140
        %v1146 = vmul.f32 1.0, %v1145
        %v1147 = vrcp.pop %v1069
        %v1148 = vmul.f32 %v1069, %v1147
        %v1149 = vsub.f32 1.0, %v1148
        %v1150 = vmul.f32 %v1147, %v1149
        %v1151 = vadd.f32 %v1147, %v1150
        %vm1152 = vweird.f32 %v1069
        %vm1153 = vweird.f32 %v1147
        %vm1154 = vmor %vm1152, %vm1153
        %v1155 = vsel %vm1154, %v1147, %v1151
        %v1156 = vand.u32 2147483647, %v1069
        %vm1157 = vcmp.eq.f32.partialorder %v1156, 8.507059e+37
        %v1158 = vand.u32 %v1069, 2147483648
        %v1159 = vor.u32 1.1754944e-38, %v1158
        %v1160 = vsel %vm1157, %v1159, %v1155
        %v1161 = vmul.f32 1.0, %v1160
        %v1162 = vrcp.pop %v1070
        %v1163 = vmul.f32 %v1070, %v1162
        %v1164 = vsub.f32 1.0, %v1163
        %v1165 = vmul.f32 %v1162, %v1164
        %v1166 = vadd.f32 %v1162, %v1165
        %vm1167 = vweird.f32 %v1070
        %vm1168 = vweird.f32 %v1162
        %vm1169 = vmor %vm1167, %vm1168
        %v1170 = vsel %vm1169, %v1162, %v1166
        %v1171 = vand.u32 2147483647, %v1070
        %vm1172 = vcmp.eq.f32.partialorder %v1171, 8.507059e+37
        %v1173 = vand.u32 %v1070, 2147483648
        %v1174 = vor.u32 1.1754944e-38, %v1173
        %v1175 = vsel %vm1172, %v1174, %v1170
        %v1176 = vmul.f32 1.0, %v1175
        %v1177 = vrcp.pop %v1071
        %v1178 = vmul.f32 %v1071, %v1177
        %v1179 = vsub.f32 1.0, %v1178
        %v1180 = vmul.f32 %v1177, %v1179
        %v1181 = vadd.f32 %v1177, %v1180
        %vm1182 = vweird.f32 %v1071
        %vm1183 = vweird.f32 %v1177
        %vm1184 = vmor %vm1182, %vm1183
        %v1185 = vsel %vm1184, %v1177, %v1181
        %v1186 = vand.u32 2147483647, %v1071
        %vm1187 = vcmp.eq.f32.partialorder %v1186, 8.507059e+37
        %v1188 = vand.u32 %v1071, 2147483648
        %v1189 = vor.u32 1.1754944e-38, %v1188
        %v1190 = vsel %vm1187, %v1189, %v1185
        %v1191 = vmul.f32 1.0, %v1190
        %v1192 = vstv %s610
        %v1193 = vmul.f32 %v1192, %v812
        %v1194 = vmul.f32 %v1192, %v827
        %v1195 = vmul.f32 %v1192, %v842
        %v1196 = vmul.f32 %v1192, %v857
        %v1197 = vmul.f32 %v1192, %v872
        %v1198 = vmul.f32 %v1192, %v887
        %v1199 = vmul.f32 %v1192, %v902
        %v1200 = vmul.f32 %v1192, %v917
        %v1201 = vld [vmem:[%s579] sm:$0xff]
        %v1202 = vld [vmem:[%s579 + $0x8] sm:$0xff]
        %v1203 = vld [vmem:[%s579 + $0x10] sm:$0xff]
        %v1204 = vld [vmem:[%s579 + $0x18] sm:$0xff]
        %v1205 = vld [vmem:[%s587] sm:$0x3]
        %1207 = vset.pattern.permute.xlu0 0
        %1208 = vperm.xlu0 %1207, %v1201
        %v1209 = vpop.permute.xlu0 %1208
        %1212 = vset.pattern.permute.xlu0 0
        %1213 = vperm.xlu0 %1212, %v1202
        %v1214 = vpop.permute.xlu0 %1213
        %1217 = vset.pattern.permute.xlu0 0
        %1218 = vperm.xlu0 %1217, %v1203
        %v1219 = vpop.permute.xlu0 %1218
        %1222 = vset.pattern.permute.xlu0 0
        %1223 = vperm.xlu0 %1222, %v1204
        %v1224 = vpop.permute.xlu0 %1223
        %v1227 = vperm.slane %v1205, 0
        %v1228 = vperm.slane %v1205, 1
        %v1231 = vmul.f32 %v1209, %v1227
        %v1232 = vmul.f32 %v1209, %v1228
        %v1233 = vmul.f32 %v1214, %v1227
        %v1234 = vmul.f32 %v1214, %v1228
        %v1235 = vmul.f32 %v1219, %v1227
        %v1236 = vmul.f32 %v1219, %v1228
        %v1237 = vmul.f32 %v1224, %v1227
        %v1238 = vmul.f32 %v1224, %v1228
        %v1239 = vadd.f32 %v1193, %v1231
        %v1240 = vadd.f32 %v1194, %v1232
        %v1241 = vadd.f32 %v1195, %v1233
        %v1242 = vadd.f32 %v1196, %v1234
        %v1243 = vadd.f32 %v1197, %v1235
        %v1244 = vadd.f32 %v1198, %v1236
        %v1245 = vadd.f32 %v1199, %v1237
        %v1246 = vadd.f32 %v1200, %v1238
        %v1247 = vstv %s612
        %v1248 = vmul.f32 %v1247, %v1086
        %v1249 = vmul.f32 %v1247, %v1101
        %v1250 = vmul.f32 %v1247, %v1116
        %v1251 = vmul.f32 %v1247, %v1131
        %v1252 = vmul.f32 %v1247, %v1146
        %v1253 = vmul.f32 %v1247, %v1161
        %v1254 = vmul.f32 %v1247, %v1176
        %v1255 = vmul.f32 %v1247, %v1191
        %v1256 = vadd.f32 %v1239, %v1248
        %v1257 = vadd.f32 %v1240, %v1249
        %v1258 = vadd.f32 %v1241, %v1250
        %v1259 = vadd.f32 %v1242, %v1251
        %v1260 = vadd.f32 %v1243, %v1252
        %v1261 = vadd.f32 %v1244, %v1253
        %v1262 = vadd.f32 %v1245, %v1254
        %v1263 = vadd.f32 %v1246, %v1255
        %v1264 = vmul.f32 %v613, %v1256
        %v1265 = vmul.f32 %v614, %v1257
        %v1266 = vmul.f32 %v615, %v1258
        %v1267 = vmul.f32 %v616, %v1259
        %v1268 = vmul.f32 %v617, %v1260
        %v1269 = vmul.f32 %v618, %v1261
        %v1270 = vmul.f32 %v619, %v1262
        %v1271 = vmul.f32 %v620, %v1263
        %1272 = vst [vmem:[%s607] sm:$0xff] %v1264
        %1273 = vst [vmem:[%s607 + $0x8] sm:$0xff] %v1265
        %1274 = vst [vmem:[%s607 + $0x10] sm:$0xff] %v1266
        %1275 = vst [vmem:[%s607 + $0x18] sm:$0xff] %v1267
        %1276 = vst [vmem:[%s607 + $0x20] sm:$0xff] %v1268
        %1277 = vst [vmem:[%s607 + $0x28] sm:$0xff] %v1269
        %1278 = vst [vmem:[%s607 + $0x30] sm:$0xff] %v1270
        %1279 = vst [vmem:[%s607 + $0x38] sm:$0xff] %v1271
        %s1280 = smul.u32 2, %s29
        %p1281 = scmp.lt.s32.totalorder %s28, 1
        %s1282 = scalar_select %p1281, %s28, 1
        %p1283 = scmp.lt.s32.totalorder %s1280, 1
        %s1284 = scalar_select %p1283, %s1280, 1
        %s1285 = smul.addr %s1282, 8
        %s1286 = sadd.s32 %s1284, %s1285
        %s1287 = smul.addr %s1286, 8
        %s1288 = scalar_lea.vmem %s12, %s1287
        // Predicated region
        $region73: #{tumor_size_specific_attention.1} parent=67 // pred_check
          %p1289 = pneg %p346
        $region74: #{tumor_size_specific_attention.1} parent=67 // pred_check_branch
          %1291 = sbr.rel (%p1289) target = $region76
        $region75: #{tumor_size_specific_attention.1} parent=67 // pred_region
          %s1292 = smul.u32 2, %s29
        $region76: #{tumor_size_specific_attention.1} parent=67 // pred_fallthru
          _
      $region68: #{tumor_size_specific_attention.1} parent=5 // pred_fallthru
        _
      %p1293 = scmp.le.s32.totalorder 2, %s19
      // Predicated region
      $region77: #{tumor_size_specific_attention.1} parent=5 // pred_check
        %p1294 = pneg %p1293
      $region78: #{tumor_size_specific_attention.1} parent=5 // pred_check_branch
        %1296 = sbr.rel (%p1294) target = $region80
      $region79: #{tumor_size_specific_attention.1} parent=5 // pred_region
        %s1297 = ssub.s32 %s19, 2
        // Predicated region
        $region81: #{tumor_size_specific_attention.1} parent=79 // pred_check
          %p1298 = pneg %p352
        $region82: #{tumor_size_specific_attention.1} parent=79 // pred_check_branch
          %1300 = sbr.rel (%p1298) target = $region84
        $region83: #{tumor_size_specific_attention.1} parent=79 // pred_region
          %s1301 = smul.u32 2, %s31
          %p1302 = scmp.lt.s32.totalorder %s30, 1
          %s1303 = scalar_select %p1302, %s30, 1
          %p1304 = scmp.lt.s32.totalorder %s1301, 1
          %s1305 = scalar_select %p1304, %s1301, 1
          %s1306 = smul.addr %s1303, 8
          %s1307 = sadd.s32 %s1305, %s1306
          %s1308 = smul.addr %s1307, 8
          %s1309 = scalar_lea.vmem %s12, %s1308
        $region84: #{tumor_size_specific_attention.1} parent=79 // pred_fallthru
          _
      $region80: #{tumor_size_specific_attention.1} parent=5 // pred_fallthru
        _
    $region6: #{tumor_size_specific_attention.1} parent=1 // loop_footer
      %s23 = sadd.s32 1, %s19
    $region7: #{tumor_size_specific_attention.1} parent=1 // loop_footer_branch
      %18 = sbr.rel target = $region3
    $region8: #{tumor_size_specific_attention.1} parent=1 // loop_exit
      _
    %1310 = vsyncpa [#allocation3], 1
    %s1311 = scalar_lea.sflag [#allocation3], 1
    %1312 = vsyncpa %s1311, 1

</llo_original>
